<compile_context>
chip_gen: v6e
topology: v6e:2x2x1
jax: 0.10.0
libtpu: 0.0.40
codegen_flags: <defaults>
</compile_context>

<pallas_src>
import math
import functools

import jax
import jax.numpy as jnp
from jax import lax
from jax.experimental import pallas as pl
from jax.experimental.pallas import tpu as pltpu

LN_EPS = 1e-4  # LN default eps in the module


def _layer_norm(h, gamma, beta, eps=LN_EPS):
    mean = jnp.mean(h, axis=-1, keepdims=True)
    c = h - mean
    var = jnp.mean(c * c, axis=-1, keepdims=True)      # biased variance, as in LN.forward
    return c * lax.rsqrt(var + eps) * gamma + beta


def _transformer_block_kernel(
    x_ref,
    wqkv_ref, wu_ref, bu_ref,
    w1_ref, b1_ref, w2_ref, b2_ref,
    g1_ref, be1_ref, g2_ref, be2_ref,
    o_ref,
    ctx_ref,                                           # VMEM scratch (TB*S, D) f32
    *, heads, causal,
):
    TB, S, D = x_ref.shape
    hd = D // heads
    N = TB * S
    scale = 1.0 / math.sqrt(hd)

    x = x_ref[...].reshape(N, D)                       # (TB*S, D) f32

    # --- LN1 ---
    h = _layer_norm(x, g1_ref[...], be1_ref[...])

    # --- fused Q/K/V projection: bf16 x bf16 on the MXU, f32 accumulation ---
    qkv = jnp.dot(h.astype(jnp.bfloat16), wqkv_ref[...],
                  preferred_element_type=jnp.float32)  # (N, 3D)
    q = (qkv[:, :D] * scale).reshape(TB, S, D)         # fold 1/sqrt(head_dim) into Q
    k = qkv[:, D:2 * D].reshape(TB, S, D)
    v = qkv[:, 2 * D:].reshape(TB, S, D)

    # --- causal mask bias: built once, hoisted out of the unrolled head loop ---
    if causal:
        row = lax.broadcasted_iota(jnp.int32, (S, S), 0)
        col = lax.broadcasted_iota(jnp.int32, (S, S), 1)
        bias = jnp.where(col > row, -jnp.inf, 0.0).astype(jnp.float32)   # triu(.., diag=1)
        bias = jnp.broadcast_to(bias[None], (TB, S, S))

    # --- per-head scaled dot-product attention, batched over the TB batch dim ---
    for hh in range(heads):                            # static unrolled loop over heads
        sl = slice(hh * hd, (hh + 1) * hd)
        qh = q[:, :, sl].astype(jnp.bfloat16)          # (TB, S, hd)
        kh = k[:, :, sl].astype(jnp.bfloat16)
        vh = v[:, :, sl].astype(jnp.bfloat16)
        s = jnp.einsum("bqd,bkd->bqk", qh, kh,
                       preferred_element_type=jnp.float32)        # (TB, S, S)
        if causal:
            s = s + bias
        s = s - jnp.max(s, axis=-1, keepdims=True)
        p = jnp.exp(s)
        p = p * pl.reciprocal(jnp.sum(p, axis=-1, keepdims=True), approx=True)
        ctx_h = jnp.einsum("bqk,bkd->bqd", p.astype(jnp.bfloat16), vh,
                           preferred_element_type=jnp.float32)    # (TB, S, hd)
        ctx_ref[:, sl] = ctx_h.reshape(N, hd)          # write head slice into scratch slab

    # --- unify Linear (with bias) ---
    attn = jnp.dot(ctx_ref[...].astype(jnp.bfloat16), wu_ref[...],
                   preferred_element_type=jnp.float32) + bu_ref[...]

    # --- residual 1 ---
    x1 = x + attn

    # --- LN2 + feed-forward ---
    h2 = _layer_norm(x1, g2_ref[...], be2_ref[...])
    f = jnp.dot(h2.astype(jnp.bfloat16), w1_ref[...],
                preferred_element_type=jnp.float32) + b1_ref[...]
    f = jnp.maximum(f, 0.0)                            # ReLU
    f = jnp.dot(f.astype(jnp.bfloat16), w2_ref[...],
                preferred_element_type=jnp.float32) + b2_ref[...]

    # --- residual 2 ---
    o_ref[...] = (x1 + f).reshape(TB, S, D)


def _pick_block_batch(B, S, max_rows=256):
    """Largest divisor of B keeping TB*S rows per step <= max_rows (amortize per-step overhead)."""
    tb = 1
    for cand in range(1, B + 1):
        if B % cand == 0 and cand * S <= max_rows:
            tb = cand
    return tb


def transformer_block(x, params, *, heads, causal_mask, block_batch=None):
    B, S, D = x.shape
    TB = block_batch if block_batch is not None else _pick_block_batch(B, S)
    assert B % TB == 0

    # Fuse Q/K/V weights into one (D, 3D) matrix; cast all matmul weights to bf16 wrapper-side.
    wqkv = jnp.concatenate(
        [params["wq"], params["wk"], params["wv"]], axis=1).astype(jnp.bfloat16)
    args = (
        wqkv,
        params["wu"].astype(jnp.bfloat16), params["bu"],
        params["w1"].astype(jnp.bfloat16), params["b1"],
        params["w2"].astype(jnp.bfloat16), params["b2"],
        params["g1"], params["be1"], params["g2"], params["be2"],
    )

    def full_spec(a):
        # whole (small) parameter resident in VMEM across the grid
        nd = a.ndim
        return pl.BlockSpec(a.shape, lambda b, _nd=nd: (0,) * _nd)

    kernel = functools.partial(_transformer_block_kernel, heads=heads, causal=causal_mask)

    return pl.pallas_call(
        kernel,
        out_shape=jax.ShapeDtypeStruct((B, S, D), jnp.float32),
        grid_spec=pltpu.PrefetchScalarGridSpec(
            num_scalar_prefetch=0,
            grid=(B // TB,),
            in_specs=[pl.BlockSpec((TB, S, D), lambda b: (b, 0, 0))]
                     + [full_spec(a) for a in args],
            out_specs=pl.BlockSpec((TB, S, D), lambda b: (b, 0, 0)),
            scratch_shapes=[pltpu.VMEM((TB * S, D), jnp.float32)],
        ),
        compiler_params=pltpu.CompilerParams(dimension_semantics=("parallel",)),
    )(x, *args)


def transformer_block_ref(x, params, *, heads, causal_mask):
    """Pure-JAX (f32) reference mirroring the PyTorch forward."""
    B, S, D = x.shape
    hd = D // heads

    def ln(h, g, b):
        mean = jnp.mean(h, axis=-1, keepdims=True)
        var = jnp.mean((h - mean) ** 2, axis=-1, keepdims=True)
        return (h - mean) / jnp.sqrt(var + LN_EPS) * g + b

    h = ln(x, params["g1"], params["be1"])
    q = h @ params["wq"]
    k = h @ params["wk"]
    v = h @ params["wv"]

    def split(t):
        return t.reshape(B, S, heads, hd).transpose(0, 2, 1, 3)

    q, k, v = split(q), split(k), split(v)
    s = jnp.einsum("bhqd,bhkd->bhqk", q, k) / math.sqrt(hd)
    if causal_mask:
        mask = jnp.triu(jnp.ones((S, S), dtype=bool), k=1)
        s = jnp.where(mask, -jnp.inf, s)
    p = jax.nn.softmax(s, axis=-1)
    ctx = jnp.einsum("bhqk,bhkd->bhqd", p, v).transpose(0, 2, 1, 3).reshape(B, S, D)
    attn = ctx @ params["wu"] + params["bu"]
    x1 = x + attn
    h2 = ln(x1, params["g2"], params["be2"])
    f = jnp.maximum(h2 @ params["w1"] + params["b1"], 0.0)
    f = f @ params["w2"] + params["b2"]
    return x1 + f


if __name__ == "__main__":
    B, S, D, H, F = 2, 8, 32, 4, 64   # batch, seq_len, model_dim, heads, ff_dim
    key = jax.random.PRNGKey(0)
    ks = jax.random.split(key, 10)

    params = {
        # Linear weights stored pre-transposed: (in, out)
        "wq": jax.random.normal(ks[0], (D, D), jnp.float32) * 0.05,
        "wk": jax.random.normal(ks[1], (D, D), jnp.float32) * 0.05,
        "wv": jax.random.normal(ks[2], (D, D), jnp.float32) * 0.05,
        "wu": jax.random.normal(ks[3], (D, D), jnp.float32) * 0.05,
        "bu": jax.random.normal(ks[4], (1, D), jnp.float32) * 0.05,
        "w1": jax.random.normal(ks[5], (D, F), jnp.float32) * 0.05,
        "b1": jax.random.normal(ks[6], (1, F), jnp.float32) * 0.05,
        "w2": jax.random.normal(ks[7], (F, D), jnp.float32) * 0.05,
        "b2": jax.random.normal(ks[8], (1, D), jnp.float32) * 0.05,
        # LN params: gamma = ones, beta = zeros (as in LN.__init__)
        "g1": jnp.ones((1, D), jnp.float32),
        "be1": jnp.zeros((1, D), jnp.float32),
        "g2": jnp.ones((1, D), jnp.float32),
        "be2": jnp.zeros((1, D), jnp.float32),
    }

    x = jax.random.normal(ks[9], (B, S, D), jnp.float32)

    out = jax.block_until_ready(transformer_block(x, params, heads=H, causal_mask=True))
    ref = transformer_block_ref(x, params, heads=H, causal_mask=True)
    assert out.shape == (B, S, D)
    # bf16 MXU inputs -> loosened tolerance vs. the pure-f32 reference.
    assert jnp.allclose(out, ref, atol=2e-2, rtol=2e-2), "mismatch vs JAX reference"
    print("KERNEL_OK")
</pallas_src>

<mosaic_0001>
module attributes {stable_mosaic.version = 11 : i64} {
  func.func @_transformer_block_kernel(%arg0: i32, %arg1: memref<2x8x32xf32, #tpu.memory_space<vmem>>, %arg2: memref<32x96xbf16, #tpu.memory_space<vmem>>, %arg3: memref<32x32xbf16, #tpu.memory_space<vmem>>, %arg4: memref<1x32xf32, #tpu.memory_space<vmem>>, %arg5: memref<32x64xbf16, #tpu.memory_space<vmem>>, %arg6: memref<1x64xf32, #tpu.memory_space<vmem>>, %arg7: memref<64x32xbf16, #tpu.memory_space<vmem>>, %arg8: memref<1x32xf32, #tpu.memory_space<vmem>>, %arg9: memref<1x32xf32, #tpu.memory_space<vmem>>, %arg10: memref<1x32xf32, #tpu.memory_space<vmem>>, %arg11: memref<1x32xf32, #tpu.memory_space<vmem>>, %arg12: memref<1x32xf32, #tpu.memory_space<vmem>>, %arg13: memref<2x8x32xf32, #tpu.memory_space<vmem>>, %arg14: memref<16x32xf32, #tpu.memory_space<vmem>>) attributes {dimension_semantics = [#tpu.dimension_semantics<parallel>], iteration_bounds = array<i64: 1>, scalar_prefetch = 0 : i64, scratch_operands = 1 : i64, tpu.core_type = #tpu.core_type<tc>, window_params = [{transform_indices = @transform_0, window_bounds = array<i64: 2, 8, 32>}, {pipeline_mode = #tpu.pipeline_mode<synchronous>, transform_indices = @transform_1, window_bounds = array<i64: 32, 96>}, {pipeline_mode = #tpu.pipeline_mode<synchronous>, transform_indices = @transform_2, window_bounds = array<i64: 32, 32>}, {pipeline_mode = #tpu.pipeline_mode<synchronous>, transform_indices = @transform_3, window_bounds = array<i64: 1, 32>}, {pipeline_mode = #tpu.pipeline_mode<synchronous>, transform_indices = @transform_4, window_bounds = array<i64: 32, 64>}, {pipeline_mode = #tpu.pipeline_mode<synchronous>, transform_indices = @transform_5, window_bounds = array<i64: 1, 64>}, {pipeline_mode = #tpu.pipeline_mode<synchronous>, transform_indices = @transform_6, window_bounds = array<i64: 64, 32>}, {pipeline_mode = #tpu.pipeline_mode<synchronous>, transform_indices = @transform_7, window_bounds = array<i64: 1, 32>}, {pipeline_mode = #tpu.pipeline_mode<synchronous>, transform_indices = @transform_8, window_bounds = array<i64: 1, 32>}, {pipeline_mode = #tpu.pipeline_mode<synchronous>, transform_indices = @transform_9, window_bounds = array<i64: 1, 32>}, {pipeline_mode = #tpu.pipeline_mode<synchronous>, transform_indices = @transform_10, window_bounds = array<i64: 1, 32>}, {pipeline_mode = #tpu.pipeline_mode<synchronous>, transform_indices = @transform_11, window_bounds = array<i64: 1, 32>}, {transform_indices = @transform_12, window_bounds = array<i64: 2, 8, 32>}]} {
    %c0 = arith.constant 0 : index
    %c0_0 = arith.constant 0 : index
    %c0_1 = arith.constant 0 : index
    %0 = vector.load %arg1[%c0, %c0_0, %c0_1] : memref<2x8x32xf32, #tpu.memory_space<vmem>>, vector<2x8x32xf32>
    %1 = vector.shape_cast %0 : vector<2x8x32xf32> to vector<16x32xf32>
    %c0_2 = arith.constant 0 : index
    %c0_3 = arith.constant 0 : index
    %2 = vector.load %arg9[%c0_2, %c0_3] : memref<1x32xf32, #tpu.memory_space<vmem>>, vector<1x32xf32>
    %c0_4 = arith.constant 0 : index
    %c0_5 = arith.constant 0 : index
    %3 = vector.load %arg10[%c0_4, %c0_5] : memref<1x32xf32, #tpu.memory_space<vmem>>, vector<1x32xf32>
    %cst = arith.constant dense<0.000000e+00> : vector<16xf32>
    %4 = vector.multi_reduction <add>, %1, %cst [1] : vector<16x32xf32> to vector<16xf32>
    %5 = vector.shape_cast %4 : vector<16xf32> to vector<16x1xf32>
    %cst_6 = arith.constant 3.200000e+01 : f32
    %6 = vector.broadcast %cst_6 : f32 to vector<16x1xf32>
    %7 = arith.divf %5, %6 : vector<16x1xf32>
    %8 = vector.broadcast %7 : vector<16x1xf32> to vector<16x32xf32>
    %9 = arith.subf %1, %8 : vector<16x32xf32>
    %10 = arith.mulf %9, %9 : vector<16x32xf32>
    %cst_7 = arith.constant dense<0.000000e+00> : vector<16xf32>
    %11 = vector.multi_reduction <add>, %10, %cst_7 [1] : vector<16x32xf32> to vector<16xf32>
    %12 = vector.shape_cast %11 : vector<16xf32> to vector<16x1xf32>
    %cst_8 = arith.constant 3.200000e+01 : f32
    %13 = vector.broadcast %cst_8 : f32 to vector<16x1xf32>
    %14 = arith.divf %12, %13 : vector<16x1xf32>
    %cst_9 = arith.constant 9.99999974E-5 : f32
    %15 = vector.broadcast %cst_9 : f32 to vector<16x1xf32>
    %16 = arith.addf %14, %15 : vector<16x1xf32>
    %17 = math.rsqrt %16 : vector<16x1xf32>
    %18 = vector.broadcast %17 : vector<16x1xf32> to vector<16x32xf32>
    %19 = arith.mulf %9, %18 : vector<16x32xf32>
    %20 = vector.broadcast %2 : vector<1x32xf32> to vector<16x32xf32>
    %21 = arith.mulf %19, %20 : vector<16x32xf32>
    %22 = vector.broadcast %3 : vector<1x32xf32> to vector<16x32xf32>
    %23 = arith.addf %21, %22 : vector<16x32xf32>
    %24 = arith.truncf %23 : vector<16x32xf32> to vector<16x32xbf16>
    %c0_10 = arith.constant 0 : index
    %c0_11 = arith.constant 0 : index
    %25 = vector.load %arg2[%c0_10, %c0_11] : memref<32x96xbf16, #tpu.memory_space<vmem>>, vector<32x96xbf16>
    %cst_12 = arith.constant dense<0.000000e+00> : vector<16x96xf32>
    %26 = tpu.matmul %24, %25, %cst_12 {dimension_numbers = #tpu.dot_dimension_numbers<[1], [0], [0], [1], [0, 0, 1, 1], [], []>} : vector<16x32xbf16>, vector<32x96xbf16>, vector<16x96xf32> -> vector<16x96xf32>
    %27 = vector.extract_strided_slice %26 {offsets = [0, 0], sizes = [16, 32], strides = [1, 1]} : vector<16x96xf32> to vector<16x32xf32>
    %cst_13 = arith.constant 0.353553385 : f32
    %28 = vector.broadcast %cst_13 : f32 to vector<16x32xf32>
    %29 = arith.mulf %27, %28 : vector<16x32xf32>
    %30 = vector.shape_cast %29 : vector<16x32xf32> to vector<2x8x32xf32>
    %31 = vector.extract_strided_slice %26 {offsets = [0, 32], sizes = [16, 32], strides = [1, 1]} : vector<16x96xf32> to vector<16x32xf32>
    %32 = vector.shape_cast %31 : vector<16x32xf32> to vector<2x8x32xf32>
    %33 = vector.extract_strided_slice %26 {offsets = [0, 64], sizes = [16, 32], strides = [1, 1]} : vector<16x96xf32> to vector<16x32xf32>
    %34 = vector.shape_cast %33 : vector<16x32xf32> to vector<2x8x32xf32>
    %35 = tpu.iota {dimensions = array<i32: 0>} : vector<8x8xi32>
    %36 = tpu.iota {dimensions = array<i32: 1>} : vector<8x8xi32>
    %37 = arith.cmpi sgt, %36, %35 : vector<8x8xi32>
    %cst_14 = arith.constant 0xFF800000 : f32
    %cst_15 = arith.constant 0.000000e+00 : f32
    %38 = vector.broadcast %cst_14 : f32 to vector<8x8xf32>
    %39 = vector.broadcast %cst_15 : f32 to vector<8x8xf32>
    %40 = arith.select %37, %38, %39 : vector<8x8xi1>, vector<8x8xf32>
    %41 = vector.shape_cast %40 : vector<8x8xf32> to vector<1x8x8xf32>
    %42 = vector.shape_cast %41 : vector<1x8x8xf32> to vector<1x8x8xf32>
    %43 = vector.broadcast %42 : vector<1x8x8xf32> to vector<2x8x8xf32>
    %44 = vector.extract_strided_slice %30 {offsets = [0, 0, 0], sizes = [2, 8, 8], strides = [1, 1, 1]} : vector<2x8x32xf32> to vector<2x8x8xf32>
    %45 = arith.truncf %44 : vector<2x8x8xf32> to vector<2x8x8xbf16>
    %46 = vector.extract_strided_slice %32 {offsets = [0, 0, 0], sizes = [2, 8, 8], strides = [1, 1, 1]} : vector<2x8x32xf32> to vector<2x8x8xf32>
    %47 = arith.truncf %46 : vector<2x8x8xf32> to vector<2x8x8xbf16>
    %48 = vector.extract_strided_slice %34 {offsets = [0, 0, 0], sizes = [2, 8, 8], strides = [1, 1, 1]} : vector<2x8x32xf32> to vector<2x8x8xf32>
    %49 = arith.truncf %48 : vector<2x8x8xf32> to vector<2x8x8xbf16>
    "tpu.trace_start"() <{level = 10 : i32, message = "bqd,bkd->bqk"}> : () -> ()
    %cst_16 = arith.constant dense<0.000000e+00> : vector<2x8x8xf32>
    %50 = tpu.matmul %45, %47, %cst_16 {dimension_numbers = #tpu.dot_dimension_numbers<[2], [2], [1], [1], [0, 0, 0, 1, 1, 1], [0], [0]>} : vector<2x8x8xbf16>, vector<2x8x8xbf16>, vector<2x8x8xf32> -> vector<2x8x8xf32>
    "tpu.trace_stop"() : () -> ()
    %51 = arith.addf %50, %43 : vector<2x8x8xf32>
    %cst_17 = arith.constant dense<0xFF800000> : vector<2x8xf32>
    %52 = vector.multi_reduction <maximumf>, %51, %cst_17 [2] : vector<2x8x8xf32> to vector<2x8xf32>
    %53 = vector.shape_cast %52 : vector<2x8xf32> to vector<2x8x1xf32>
    %54 = vector.broadcast %53 : vector<2x8x1xf32> to vector<2x8x8xf32>
    %55 = arith.subf %51, %54 : vector<2x8x8xf32>
    %56 = math.exp %55 : vector<2x8x8xf32>
    %cst_18 = arith.constant dense<0.000000e+00> : vector<2x8xf32>
    %57 = vector.multi_reduction <add>, %56, %cst_18 [2] : vector<2x8x8xf32> to vector<2x8xf32>
    %58 = vector.shape_cast %57 : vector<2x8xf32> to vector<2x8x1xf32>
    %59 = tpu.reciprocal %58 {approx = true} : vector<2x8x1xf32> -> vector<2x8x1xf32>
    %60 = vector.broadcast %59 : vector<2x8x1xf32> to vector<2x8x8xf32>
    %61 = arith.mulf %56, %60 : vector<2x8x8xf32>
    %62 = arith.truncf %61 : vector<2x8x8xf32> to vector<2x8x8xbf16>
    "tpu.trace_start"() <{level = 10 : i32, message = "bqk,bkd->bqd"}> : () -> ()
    %cst_19 = arith.constant dense<0.000000e+00> : vector<2x8x8xf32>
    %63 = tpu.matmul %62, %49, %cst_19 {dimension_numbers = #tpu.dot_dimension_numbers<[2], [1], [1], [2], [0, 0, 0, 1, 1, 2], [0], [0]>} : vector<2x8x8xbf16>, vector<2x8x8xbf16>, vector<2x8x8xf32> -> vector<2x8x8xf32>
    "tpu.trace_stop"() : () -> ()
    %64 = vector.shape_cast %63 : vector<2x8x8xf32> to vector<16x8xf32>
    %c0_20 = arith.constant 0 : index
    %c0_21 = arith.constant 0 : index
    %65 = vector.load %arg14[%c0_20, %c0_21] : memref<16x32xf32, #tpu.memory_space<vmem>>, vector<16x8xf32>
    tpu.vector_store %arg14[%c0_20, %c0_21], %64 {strides = array<i32>} : memref<16x32xf32, #tpu.memory_space<vmem>>, vector<16x8xf32>,
    %66 = vector.extract_strided_slice %30 {offsets = [0, 0, 8], sizes = [2, 8, 8], strides = [1, 1, 1]} : vector<2x8x32xf32> to vector<2x8x8xf32>
    %67 = arith.truncf %66 : vector<2x8x8xf32> to vector<2x8x8xbf16>
    %68 = vector.extract_strided_slice %32 {offsets = [0, 0, 8], sizes = [2, 8, 8], strides = [1, 1, 1]} : vector<2x8x32xf32> to vector<2x8x8xf32>
    %69 = arith.truncf %68 : vector<2x8x8xf32> to vector<2x8x8xbf16>
    %70 = vector.extract_strided_slice %34 {offsets = [0, 0, 8], sizes = [2, 8, 8], strides = [1, 1, 1]} : vector<2x8x32xf32> to vector<2x8x8xf32>
    %71 = arith.truncf %70 : vector<2x8x8xf32> to vector<2x8x8xbf16>
    "tpu.trace_start"() <{level = 10 : i32, message = "bqd,bkd->bqk"}> : () -> ()
    %cst_22 = arith.constant dense<0.000000e+00> : vector<2x8x8xf32>
    %72 = tpu.matmul %67, %69, %cst_22 {dimension_numbers = #tpu.dot_dimension_numbers<[2], [2], [1], [1], [0, 0, 0, 1, 1, 1], [0], [0]>} : vector<2x8x8xbf16>, vector<2x8x8xbf16>, vector<2x8x8xf32> -> vector<2x8x8xf32>
    "tpu.trace_stop"() : () -> ()
    %73 = arith.addf %72, %43 : vector<2x8x8xf32>
    %cst_23 = arith.constant dense<0xFF800000> : vector<2x8xf32>
    %74 = vector.multi_reduction <maximumf>, %73, %cst_23 [2] : vector<2x8x8xf32> to vector<2x8xf32>
    %75 = vector.shape_cast %74 : vector<2x8xf32> to vector<2x8x1xf32>
    %76 = vector.broadcast %75 : vector<2x8x1xf32> to vector<2x8x8xf32>
    %77 = arith.subf %73, %76 : vector<2x8x8xf32>
    %78 = math.exp %77 : vector<2x8x8xf32>
    %cst_24 = arith.constant dense<0.000000e+00> : vector<2x8xf32>
    %79 = vector.multi_reduction <add>, %78, %cst_24 [2] : vector<2x8x8xf32> to vector<2x8xf32>
    %80 = vector.shape_cast %79 : vector<2x8xf32> to vector<2x8x1xf32>
    %81 = tpu.reciprocal %80 {approx = true} : vector<2x8x1xf32> -> vector<2x8x1xf32>
    %82 = vector.broadcast %81 : vector<2x8x1xf32> to vector<2x8x8xf32>
    %83 = arith.mulf %78, %82 : vector<2x8x8xf32>
    %84 = arith.truncf %83 : vector<2x8x8xf32> to vector<2x8x8xbf16>
    "tpu.trace_start"() <{level = 10 : i32, message = "bqk,bkd->bqd"}> : () -> ()
    %cst_25 = arith.constant dense<0.000000e+00> : vector<2x8x8xf32>
    %85 = tpu.matmul %84, %71, %cst_25 {dimension_numbers = #tpu.dot_dimension_numbers<[2], [1], [1], [2], [0, 0, 0, 1, 1, 2], [0], [0]>} : vector<2x8x8xbf16>, vector<2x8x8xbf16>, vector<2x8x8xf32> -> vector<2x8x8xf32>
    "tpu.trace_stop"() : () -> ()
    %86 = vector.shape_cast %85 : vector<2x8x8xf32> to vector<16x8xf32>
    %c0_26 = arith.constant 0 : index
    %c8 = arith.constant 8 : index
    %87 = vector.load %arg14[%c0_26, %c8] : memref<16x32xf32, #tpu.memory_space<vmem>>, vector<16x8xf32>
    tpu.vector_store %arg14[%c0_26, %c8], %86 {strides = array<i32>} : memref<16x32xf32, #tpu.memory_space<vmem>>, vector<16x8xf32>,
    %88 = vector.extract_strided_slice %30 {offsets = [0, 0, 16], sizes = [2, 8, 8], strides = [1, 1, 1]} : vector<2x8x32xf32> to vector<2x8x8xf32>
    %89 = arith.truncf %88 : vector<2x8x8xf32> to vector<2x8x8xbf16>
    %90 = vector.extract_strided_slice %32 {offsets = [0, 0, 16], sizes = [2, 8, 8], strides = [1, 1, 1]} : vector<2x8x32xf32> to vector<2x8x8xf32>
    %91 = arith.truncf %90 : vector<2x8x8xf32> to vector<2x8x8xbf16>
    %92 = vector.extract_strided_slice %34 {offsets = [0, 0, 16], sizes = [2, 8, 8], strides = [1, 1, 1]} : vector<2x8x32xf32> to vector<2x8x8xf32>
    %93 = arith.truncf %92 : vector<2x8x8xf32> to vector<2x8x8xbf16>
    "tpu.trace_start"() <{level = 10 : i32, message = "bqd,bkd->bqk"}> : () -> ()
    %cst_27 = arith.constant dense<0.000000e+00> : vector<2x8x8xf32>
    %94 = tpu.matmul %89, %91, %cst_27 {dimension_numbers = #tpu.dot_dimension_numbers<[2], [2], [1], [1], [0, 0, 0, 1, 1, 1], [0], [0]>} : vector<2x8x8xbf16>, vector<2x8x8xbf16>, vector<2x8x8xf32> -> vector<2x8x8xf32>
    "tpu.trace_stop"() : () -> ()
    %95 = arith.addf %94, %43 : vector<2x8x8xf32>
    %cst_28 = arith.constant dense<0xFF800000> : vector<2x8xf32>
    %96 = vector.multi_reduction <maximumf>, %95, %cst_28 [2] : vector<2x8x8xf32> to vector<2x8xf32>
    %97 = vector.shape_cast %96 : vector<2x8xf32> to vector<2x8x1xf32>
    %98 = vector.broadcast %97 : vector<2x8x1xf32> to vector<2x8x8xf32>
    %99 = arith.subf %95, %98 : vector<2x8x8xf32>
    %100 = math.exp %99 : vector<2x8x8xf32>
    %cst_29 = arith.constant dense<0.000000e+00> : vector<2x8xf32>
    %101 = vector.multi_reduction <add>, %100, %cst_29 [2] : vector<2x8x8xf32> to vector<2x8xf32>
    %102 = vector.shape_cast %101 : vector<2x8xf32> to vector<2x8x1xf32>
    %103 = tpu.reciprocal %102 {approx = true} : vector<2x8x1xf32> -> vector<2x8x1xf32>
    %104 = vector.broadcast %103 : vector<2x8x1xf32> to vector<2x8x8xf32>
    %105 = arith.mulf %100, %104 : vector<2x8x8xf32>
    %106 = arith.truncf %105 : vector<2x8x8xf32> to vector<2x8x8xbf16>
    "tpu.trace_start"() <{level = 10 : i32, message = "bqk,bkd->bqd"}> : () -> ()
    %cst_30 = arith.constant dense<0.000000e+00> : vector<2x8x8xf32>
    %107 = tpu.matmul %106, %93, %cst_30 {dimension_numbers = #tpu.dot_dimension_numbers<[2], [1], [1], [2], [0, 0, 0, 1, 1, 2], [0], [0]>} : vector<2x8x8xbf16>, vector<2x8x8xbf16>, vector<2x8x8xf32> -> vector<2x8x8xf32>
    "tpu.trace_stop"() : () -> ()
    %108 = vector.shape_cast %107 : vector<2x8x8xf32> to vector<16x8xf32>
    %c0_31 = arith.constant 0 : index
    %c16 = arith.constant 16 : index
    %109 = vector.load %arg14[%c0_31, %c16] : memref<16x32xf32, #tpu.memory_space<vmem>>, vector<16x8xf32>
    tpu.vector_store %arg14[%c0_31, %c16], %108 {strides = array<i32>} : memref<16x32xf32, #tpu.memory_space<vmem>>, vector<16x8xf32>,
    %110 = vector.extract_strided_slice %30 {offsets = [0, 0, 24], sizes = [2, 8, 8], strides = [1, 1, 1]} : vector<2x8x32xf32> to vector<2x8x8xf32>
    %111 = arith.truncf %110 : vector<2x8x8xf32> to vector<2x8x8xbf16>
    %112 = vector.extract_strided_slice %32 {offsets = [0, 0, 24], sizes = [2, 8, 8], strides = [1, 1, 1]} : vector<2x8x32xf32> to vector<2x8x8xf32>
    %113 = arith.truncf %112 : vector<2x8x8xf32> to vector<2x8x8xbf16>
    %114 = vector.extract_strided_slice %34 {offsets = [0, 0, 24], sizes = [2, 8, 8], strides = [1, 1, 1]} : vector<2x8x32xf32> to vector<2x8x8xf32>
    %115 = arith.truncf %114 : vector<2x8x8xf32> to vector<2x8x8xbf16>
    "tpu.trace_start"() <{level = 10 : i32, message = "bqd,bkd->bqk"}> : () -> ()
    %cst_32 = arith.constant dense<0.000000e+00> : vector<2x8x8xf32>
    %116 = tpu.matmul %111, %113, %cst_32 {dimension_numbers = #tpu.dot_dimension_numbers<[2], [2], [1], [1], [0, 0, 0, 1, 1, 1], [0], [0]>} : vector<2x8x8xbf16>, vector<2x8x8xbf16>, vector<2x8x8xf32> -> vector<2x8x8xf32>
    "tpu.trace_stop"() : () -> ()
    %117 = arith.addf %116, %43 : vector<2x8x8xf32>
    %cst_33 = arith.constant dense<0xFF800000> : vector<2x8xf32>
    %118 = vector.multi_reduction <maximumf>, %117, %cst_33 [2] : vector<2x8x8xf32> to vector<2x8xf32>
    %119 = vector.shape_cast %118 : vector<2x8xf32> to vector<2x8x1xf32>
    %120 = vector.broadcast %119 : vector<2x8x1xf32> to vector<2x8x8xf32>
    %121 = arith.subf %117, %120 : vector<2x8x8xf32>
    %122 = math.exp %121 : vector<2x8x8xf32>
    %cst_34 = arith.constant dense<0.000000e+00> : vector<2x8xf32>
    %123 = vector.multi_reduction <add>, %122, %cst_34 [2] : vector<2x8x8xf32> to vector<2x8xf32>
    %124 = vector.shape_cast %123 : vector<2x8xf32> to vector<2x8x1xf32>
    %125 = tpu.reciprocal %124 {approx = true} : vector<2x8x1xf32> -> vector<2x8x1xf32>
    %126 = vector.broadcast %125 : vector<2x8x1xf32> to vector<2x8x8xf32>
    %127 = arith.mulf %122, %126 : vector<2x8x8xf32>
    %128 = arith.truncf %127 : vector<2x8x8xf32> to vector<2x8x8xbf16>
    "tpu.trace_start"() <{level = 10 : i32, message = "bqk,bkd->bqd"}> : () -> ()
    %cst_35 = arith.constant dense<0.000000e+00> : vector<2x8x8xf32>
    %129 = tpu.matmul %128, %115, %cst_35 {dimension_numbers = #tpu.dot_dimension_numbers<[2], [1], [1], [2], [0, 0, 0, 1, 1, 2], [0], [0]>} : vector<2x8x8xbf16>, vector<2x8x8xbf16>, vector<2x8x8xf32> -> vector<2x8x8xf32>
    "tpu.trace_stop"() : () -> ()
    %130 = vector.shape_cast %129 : vector<2x8x8xf32> to vector<16x8xf32>
    %c0_36 = arith.constant 0 : index
    %c24 = arith.constant 24 : index
    %131 = vector.load %arg14[%c0_36, %c24] : memref<16x32xf32, #tpu.memory_space<vmem>>, vector<16x8xf32>
    tpu.vector_store %arg14[%c0_36, %c24], %130 {strides = array<i32>} : memref<16x32xf32, #tpu.memory_space<vmem>>, vector<16x8xf32>,
    %c0_37 = arith.constant 0 : index
    %c0_38 = arith.constant 0 : index
    %132 = vector.load %arg14[%c0_37, %c0_38] : memref<16x32xf32, #tpu.memory_space<vmem>>, vector<16x32xf32>
    %133 = arith.truncf %132 : vector<16x32xf32> to vector<16x32xbf16>
    %c0_39 = arith.constant 0 : index
    %c0_40 = arith.constant 0 : index
    %134 = vector.load %arg3[%c0_39, %c0_40] : memref<32x32xbf16, #tpu.memory_space<vmem>>, vector<32x32xbf16>
    %cst_41 = arith.constant dense<0.000000e+00> : vector<16x32xf32>
    %135 = tpu.matmul %133, %134, %cst_41 {dimension_numbers = #tpu.dot_dimension_numbers<[1], [0], [0], [1], [0, 0, 1, 1], [], []>} : vector<16x32xbf16>, vector<32x32xbf16>, vector<16x32xf32> -> vector<16x32xf32>
    %c0_42 = arith.constant 0 : index
    %c0_43 = arith.constant 0 : index
    %136 = vector.load %arg4[%c0_42, %c0_43] : memref<1x32xf32, #tpu.memory_space<vmem>>, vector<1x32xf32>
    %137 = vector.broadcast %136 : vector<1x32xf32> to vector<16x32xf32>
    %138 = arith.addf %135, %137 : vector<16x32xf32>
    %139 = arith.addf %1, %138 : vector<16x32xf32>
    %c0_44 = arith.constant 0 : index
    %c0_45 = arith.constant 0 : index
    %140 = vector.load %arg11[%c0_44, %c0_45] : memref<1x32xf32, #tpu.memory_space<vmem>>, vector<1x32xf32>
    %c0_46 = arith.constant 0 : index
    %c0_47 = arith.constant 0 : index
    %141 = vector.load %arg12[%c0_46, %c0_47] : memref<1x32xf32, #tpu.memory_space<vmem>>, vector<1x32xf32>
    %cst_48 = arith.constant dense<0.000000e+00> : vector<16xf32>
    %142 = vector.multi_reduction <add>, %139, %cst_48 [1] : vector<16x32xf32> to vector<16xf32>
    %143 = vector.shape_cast %142 : vector<16xf32> to vector<16x1xf32>
    %cst_49 = arith.constant 3.200000e+01 : f32
    %144 = vector.broadcast %cst_49 : f32 to vector<16x1xf32>
    %145 = arith.divf %143, %144 : vector<16x1xf32>
    %146 = vector.broadcast %145 : vector<16x1xf32> to vector<16x32xf32>
    %147 = arith.subf %139, %146 : vector<16x32xf32>
    %148 = arith.mulf %147, %147 : vector<16x32xf32>
    %cst_50 = arith.constant dense<0.000000e+00> : vector<16xf32>
    %149 = vector.multi_reduction <add>, %148, %cst_50 [1] : vector<16x32xf32> to vector<16xf32>
    %150 = vector.shape_cast %149 : vector<16xf32> to vector<16x1xf32>
    %cst_51 = arith.constant 3.200000e+01 : f32
    %151 = vector.broadcast %cst_51 : f32 to vector<16x1xf32>
    %152 = arith.divf %150, %151 : vector<16x1xf32>
    %cst_52 = arith.constant 9.99999974E-5 : f32
    %153 = vector.broadcast %cst_52 : f32 to vector<16x1xf32>
    %154 = arith.addf %152, %153 : vector<16x1xf32>
    %155 = math.rsqrt %154 : vector<16x1xf32>
    %156 = vector.broadcast %155 : vector<16x1xf32> to vector<16x32xf32>
    %157 = arith.mulf %147, %156 : vector<16x32xf32>
    %158 = vector.broadcast %140 : vector<1x32xf32> to vector<16x32xf32>
    %159 = arith.mulf %157, %158 : vector<16x32xf32>
    %160 = vector.broadcast %141 : vector<1x32xf32> to vector<16x32xf32>
    %161 = arith.addf %159, %160 : vector<16x32xf32>
    %162 = arith.truncf %161 : vector<16x32xf32> to vector<16x32xbf16>
    %c0_53 = arith.constant 0 : index
    %c0_54 = arith.constant 0 : index
    %163 = vector.load %arg5[%c0_53, %c0_54] : memref<32x64xbf16, #tpu.memory_space<vmem>>, vector<32x64xbf16>
    %cst_55 = arith.constant dense<0.000000e+00> : vector<16x64xf32>
    %164 = tpu.matmul %162, %163, %cst_55 {dimension_numbers = #tpu.dot_dimension_numbers<[1], [0], [0], [1], [0, 0, 1, 1], [], []>} : vector<16x32xbf16>, vector<32x64xbf16>, vector<16x64xf32> -> vector<16x64xf32>
    %c0_56 = arith.constant 0 : index
    %c0_57 = arith.constant 0 : index
    %165 = vector.load %arg6[%c0_56, %c0_57] : memref<1x64xf32, #tpu.memory_space<vmem>>, vector<1x64xf32>
    %166 = vector.broadcast %165 : vector<1x64xf32> to vector<16x64xf32>
    %167 = arith.addf %164, %166 : vector<16x64xf32>
    %cst_58 = arith.constant 0.000000e+00 : f32
    %168 = vector.broadcast %cst_58 : f32 to vector<16x64xf32>
    %169 = arith.maximumf %167, %168 : vector<16x64xf32>
    %170 = arith.truncf %169 : vector<16x64xf32> to vector<16x64xbf16>
    %c0_59 = arith.constant 0 : index
    %c0_60 = arith.constant 0 : index
    %171 = vector.load %arg7[%c0_59, %c0_60] : memref<64x32xbf16, #tpu.memory_space<vmem>>, vector<64x32xbf16>
    %cst_61 = arith.constant dense<0.000000e+00> : vector<16x32xf32>
    %172 = tpu.matmul %170, %171, %cst_61 {dimension_numbers = #tpu.dot_dimension_numbers<[1], [0], [0], [1], [0, 0, 1, 1], [], []>} : vector<16x64xbf16>, vector<64x32xbf16>, vector<16x32xf32> -> vector<16x32xf32>
    %c0_62 = arith.constant 0 : index
    %c0_63 = arith.constant 0 : index
    %173 = vector.load %arg8[%c0_62, %c0_63] : memref<1x32xf32, #tpu.memory_space<vmem>>, vector<1x32xf32>
    %174 = vector.broadcast %173 : vector<1x32xf32> to vector<16x32xf32>
    %175 = arith.addf %172, %174 : vector<16x32xf32>
    %176 = arith.addf %139, %175 : vector<16x32xf32>
    %177 = vector.shape_cast %176 : vector<16x32xf32> to vector<2x8x32xf32>
    %c0_64 = arith.constant 0 : index
    %c0_65 = arith.constant 0 : index
    %c0_66 = arith.constant 0 : index
    %178 = vector.load %arg13[%c0_64, %c0_65, %c0_66] : memref<2x8x32xf32, #tpu.memory_space<vmem>>, vector<2x8x32xf32>
    tpu.vector_store %arg13[%c0_64, %c0_65, %c0_66], %177 {strides = array<i32>} : memref<2x8x32xf32, #tpu.memory_space<vmem>>, vector<2x8x32xf32>,
    return
  }
  func.func @transform_0(%arg0: i32) -> (i32, i32, i32) {
    %c0_i32 = arith.constant 0 : i32
    %c0_i32_0 = arith.constant 0 : i32
    %c0_i32_1 = arith.constant 0 : i32
    return %arg0, %c0_i32, %c0_i32_0 : i32, i32, i32
  }
  func.func @transform_1(%arg0: i32) -> (i32, i32) {
    %c0_i32 = arith.constant 0 : i32
    %c0_i32_0 = arith.constant 0 : i32
    %c0_i32_1 = arith.constant 0 : i32
    return %c0_i32, %c0_i32_0 : i32, i32
  }
  func.func @transform_2(%arg0: i32) -> (i32, i32) {
    %c0_i32 = arith.constant 0 : i32
    %c0_i32_0 = arith.constant 0 : i32
    %c0_i32_1 = arith.constant 0 : i32
    return %c0_i32, %c0_i32_0 : i32, i32
  }
  func.func @transform_3(%arg0: i32) -> (i32, i32) {
    %c0_i32 = arith.constant 0 : i32
    %c0_i32_0 = arith.constant 0 : i32
    %c0_i32_1 = arith.constant 0 : i32
    return %c0_i32, %c0_i32_0 : i32, i32
  }
  func.func @transform_4(%arg0: i32) -> (i32, i32) {
    %c0_i32 = arith.constant 0 : i32
    %c0_i32_0 = arith.constant 0 : i32
    %c0_i32_1 = arith.constant 0 : i32
    return %c0_i32, %c0_i32_0 : i32, i32
  }
  func.func @transform_5(%arg0: i32) -> (i32, i32) {
    %c0_i32 = arith.constant 0 : i32
    %c0_i32_0 = arith.constant 0 : i32
    %c0_i32_1 = arith.constant 0 : i32
    return %c0_i32, %c0_i32_0 : i32, i32
  }
  func.func @transform_6(%arg0: i32) -> (i32, i32) {
    %c0_i32 = arith.constant 0 : i32
    %c0_i32_0 = arith.constant 0 : i32
    %c0_i32_1 = arith.constant 0 : i32
    return %c0_i32, %c0_i32_0 : i32, i32
  }
  func.func @transform_7(%arg0: i32) -> (i32, i32) {
    %c0_i32 = arith.constant 0 : i32
    %c0_i32_0 = arith.constant 0 : i32
    %c0_i32_1 = arith.constant 0 : i32
    return %c0_i32, %c0_i32_0 : i32, i32
  }
  func.func @transform_8(%arg0: i32) -> (i32, i32) {
    %c0_i32 = arith.constant 0 : i32
    %c0_i32_0 = arith.constant 0 : i32
    %c0_i32_1 = arith.constant 0 : i32
    return %c0_i32, %c0_i32_0 : i32, i32
  }
  func.func @transform_9(%arg0: i32) -> (i32, i32) {
    %c0_i32 = arith.constant 0 : i32
    %c0_i32_0 = arith.constant 0 : i32
    %c0_i32_1 = arith.constant 0 : i32
    return %c0_i32, %c0_i32_0 : i32, i32
  }
  func.func @transform_10(%arg0: i32) -> (i32, i32) {
    %c0_i32 = arith.constant 0 : i32
    %c0_i32_0 = arith.constant 0 : i32
    %c0_i32_1 = arith.constant 0 : i32
    return %c0_i32, %c0_i32_0 : i32, i32
  }
  func.func @transform_11(%arg0: i32) -> (i32, i32) {
    %c0_i32 = arith.constant 0 : i32
    %c0_i32_0 = arith.constant 0 : i32
    %c0_i32_1 = arith.constant 0 : i32
    return %c0_i32, %c0_i32_0 : i32, i32
  }
  func.func @transform_12(%arg0: i32) -> (i32, i32, i32) {
    %c0_i32 = arith.constant 0 : i32
    %c0_i32_0 = arith.constant 0 : i32
    %c0_i32_1 = arith.constant 0 : i32
    return %arg0, %c0_i32, %c0_i32_0 : i32, i32, i32
  }
}

</mosaic_0001>

<llo_original>
// kernel: tpu_custom_call.1
$region0: #{tpu_custom_call.1}
  #allocation0 [shape = 'u32[]', space=smem, size = 0x4, offset = 0x4, fixed_abs, tag = 'smem constant byte address 0x4 - core index']
  #allocation1 [shape = 'u32[144,128]{1,0:T(1,128)}', space=vmem, size = 0x12000, scoped, tag = 'internal scratch']
  #allocation2 [shape = 'f32[16,32]{1,0:T(8,128)}', space=vmem, size = 0x2000, scoped, tag = 'scratch operand']
  %s0 = inlined_call_operand.vmem [shape: f32[2,8,32], index: 0, kind: input, shape index: {}]
  %s1 = inlined_call_operand.vmem [shape: bf16[32,96], index: 1, kind: input, shape index: {}]
  %s2 = inlined_call_operand.vmem [shape: bf16[32,32], index: 2, kind: input, shape index: {}]
  %s3 = inlined_call_operand.vmem [shape: f32[1,32], index: 3, kind: input, shape index: {}]
  %s4 = inlined_call_operand.hbm [shape: bf16[32,64], index: 4, kind: input, shape index: {}]
  %s5 = inlined_call_operand.vmem [shape: f32[1,64], index: 5, kind: input, shape index: {}]
  %s6 = inlined_call_operand.vmem [shape: bf16[64,32], index: 6, kind: input, shape index: {}]
  %s7 = inlined_call_operand.vmem [shape: f32[1,32], index: 7, kind: input, shape index: {}]
  %s8 = inlined_call_operand.vmem [shape: f32[1,32], index: 8, kind: input, shape index: {}]
  %s9 = inlined_call_operand.vmem [shape: f32[1,32], index: 9, kind: input, shape index: {}]
  %s10 = inlined_call_operand.vmem [shape: f32[1,32], index: 10, kind: input, shape index: {}]
  %s11 = inlined_call_operand.vmem [shape: f32[1,32], index: 11, kind: input, shape index: {}]
  %s12 = inlined_call_operand.hbm [shape: f32[2,8,32], index: 12, kind: output, shape index: {}]
  %s13 = sld [smem:[#allocation0]]
  $region62: #{tpu_custom_call.1} parent=0
    _
  %s15 = ssub.s32 1, %s13
  %s16 = scalar_select 0, %s15, %s13
  $region1: #{tpu_custom_call.1} parent=0
    #allocation3 [shape = 'u8[8192]{0}', space=vmem, size = 0x2000, scoped, tag = 'input window, operand 4, single buffered']
    #allocation4 [shape = 's32[1]{0}', space=sflag, size = 0x4, scoped, tag = 'scoped memory for tpu_custom_call.1']
    #allocation5 [shape = 's32[1]{0}', space=sflag, size = 0x4, scoped, tag = 'scoped memory for tpu_custom_call.1']
    #allocation6 [shape = 'u8[8192]{0}', space=vmem, size = 0x2000, scoped, tag = 'output window, operand 0, single buffered']
    %17 = vsyncpa [#allocation4], 0
    %18 = vsyncpa [#allocation5], 0
    // Predicated region
    $region2: #{tpu_custom_call.1} parent=1 // pred_check
      _
    $region3: #{tpu_custom_call.1} parent=1 // pred_check_branch
      %20 = sbr.rel (0) target = $region5
    $region4: #{tpu_custom_call.1} parent=1 // pred_region
      _
    $region5: #{tpu_custom_call.1} parent=1 // pred_fallthru
      _
    // Predicated region
    $region6: #{tpu_custom_call.1} parent=1 // pred_check
      _
    $region7: #{tpu_custom_call.1} parent=1 // pred_check_branch
      %22 = sbr.rel (0) target = $region9
    $region8: #{tpu_custom_call.1} parent=1 // pred_region
      _
    $region9: #{tpu_custom_call.1} parent=1 // pred_fallthru
      _
    // Predicated region
    $region10: #{tpu_custom_call.1} parent=1 // pred_check
      _
    $region11: #{tpu_custom_call.1} parent=1 // pred_check_branch
      %24 = sbr.rel (0) target = $region13
    $region12: #{tpu_custom_call.1} parent=1 // pred_region
      _
    $region13: #{tpu_custom_call.1} parent=1 // pred_fallthru
      _
    // Predicated region
    $region14: #{tpu_custom_call.1} parent=1 // pred_check
      _
    $region15: #{tpu_custom_call.1} parent=1 // pred_check_branch
      %26 = sbr.rel (0) target = $region17
    $region16: #{tpu_custom_call.1} parent=1 // pred_region
      _
    $region17: #{tpu_custom_call.1} parent=1 // pred_fallthru
      _
    // Predicated region
    $region18: #{tpu_custom_call.1} parent=1 // pred_check
      _
    $region19: #{tpu_custom_call.1} parent=1 // pred_check_branch
      %28 = sbr.rel (0) target = $region21
    $region20: #{tpu_custom_call.1} parent=1 // pred_region
      %s30 = ssub.s32 256, 256
      %31 = vsyncadd [#allocation4], %s30
      %s32 = sshll.u32 [#allocation3], 4
      %s33 = int_to_ptr.vmem [resolvable:$true] %s32
      %38 = dma.hbm_to_vmem [thread:$0]  %s4, 256, %s33, [#allocation4], 64, 64, 4
    $region21: #{tpu_custom_call.1} parent=1 // pred_fallthru
      _
    // Predicated region
    $region22: #{tpu_custom_call.1} parent=1 // pred_check
      _
    $region23: #{tpu_custom_call.1} parent=1 // pred_check_branch
      %40 = sbr.rel (0) target = $region25
    $region24: #{tpu_custom_call.1} parent=1 // pred_region
      _
    $region25: #{tpu_custom_call.1} parent=1 // pred_fallthru
      _
    // Predicated region
    $region26: #{tpu_custom_call.1} parent=1 // pred_check
      _
    $region27: #{tpu_custom_call.1} parent=1 // pred_check_branch
      %42 = sbr.rel (0) target = $region29
    $region28: #{tpu_custom_call.1} parent=1 // pred_region
      _
    $region29: #{tpu_custom_call.1} parent=1 // pred_fallthru
      _
    // Predicated region
    $region30: #{tpu_custom_call.1} parent=1 // pred_check
      _
    $region31: #{tpu_custom_call.1} parent=1 // pred_check_branch
      %44 = sbr.rel (0) target = $region33
    $region32: #{tpu_custom_call.1} parent=1 // pred_region
      _
    $region33: #{tpu_custom_call.1} parent=1 // pred_fallthru
      _
    // Predicated region
    $region34: #{tpu_custom_call.1} parent=1 // pred_check
      _
    $region35: #{tpu_custom_call.1} parent=1 // pred_check_branch
      %46 = sbr.rel (0) target = $region37
    $region36: #{tpu_custom_call.1} parent=1 // pred_region
      _
    $region37: #{tpu_custom_call.1} parent=1 // pred_fallthru
      _
    // Predicated region
    $region38: #{tpu_custom_call.1} parent=1 // pred_check
      _
    $region39: #{tpu_custom_call.1} parent=1 // pred_check_branch
      %48 = sbr.rel (0) target = $region41
    $region40: #{tpu_custom_call.1} parent=1 // pred_region
      _
    $region41: #{tpu_custom_call.1} parent=1 // pred_fallthru
      _
    // Predicated region
    $region42: #{tpu_custom_call.1} parent=1 // pred_check
      _
    $region43: #{tpu_custom_call.1} parent=1 // pred_check_branch
      %50 = sbr.rel (0) target = $region45
    $region44: #{tpu_custom_call.1} parent=1 // pred_region
      _
    $region45: #{tpu_custom_call.1} parent=1 // pred_fallthru
      _
    // Predicated region
    $region46: #{tpu_custom_call.1} parent=1 // pred_check
      _
    $region47: #{tpu_custom_call.1} parent=1 // pred_check_branch
      %52 = sbr.rel (0) target = $region49
    $region48: #{tpu_custom_call.1} parent=1 // pred_region
      _
    $region49: #{tpu_custom_call.1} parent=1 // pred_fallthru
      _
    // Predicated region
    $region50: #{tpu_custom_call.1} parent=1 // pred_check
      _
    $region51: #{tpu_custom_call.1} parent=1 // pred_check_branch
      %54 = sbr.rel (0) target = $region53
    $region52: #{tpu_custom_call.1} parent=1 // pred_region
      %55 = dma.done [#allocation4], 256
    $region53: #{tpu_custom_call.1} parent=1 // pred_fallthru
      _
    %v57 = vld [vmem:[%s0] sm:$0xff]
    %v58 = vld [vmem:[%s0 + $0x8] sm:$0xff]
    %v59 = vld [vmem:[%s8] sm:$0x1]
    %v60 = vld [vmem:[%s9] sm:$0x1]
    %vm61 = vcmask 261120
    %v62 = vsel %vm61, %v57, 0.0
    %63 = vadd.xlane.f32.xlu0 %v62
    %v64 = vpop.xlane.xlu0 %63
    %v65 = vsel %vm61, %v58, 0.0
    %66 = vadd.xlane.f32.xlu0 %v65
    %v67 = vpop.xlane.xlu0 %66
    %v68 = vrcp.pop 32.0
    %v69 = vmul.f32 %v64, %v68
    %v70 = vmul.f32 %v67, %v68
    %v71 = vsub.f32 %v57, %v69
    %v72 = vsub.f32 %v58, %v70
    %v73 = vmul.f32 %v71, %v71
    %v74 = vmul.f32 %v72, %v72
    %v75 = vsel %vm61, %v73, 0.0
    %76 = vadd.xlane.f32.xlu0 %v75
    %v77 = vpop.xlane.xlu0 %76
    %v78 = vsel %vm61, %v74, 0.0
    %79 = vadd.xlane.f32.xlu0 %v78
    %v80 = vpop.xlane.xlu0 %79
    %v81 = vmul.f32 %v77, %v68
    %v82 = vmul.f32 %v80, %v68
    %v83 = vadd.f32 %v81, 0.0001
    %v84 = vadd.f32 %v82, 0.0001
    %v85 = vrsqrt.pop %v83
    %v86 = vrsqrt.pop %v84
    %v87 = vmul.f32 %v71, %v85
    %v88 = vmul.f32 %v72, %v86
    %v90 = vlaneseq
    %v91 = vshrl.u32 %v90, 7
    %v92 = vsub.s32 0, %v91
    %v93 = vrot.slane %v59, %v92
    %v95 = vmul.f32 %v87, %v93
    %v96 = vmul.f32 %v88, %v93
    %v98 = vlaneseq
    %v99 = vshrl.u32 %v98, 7
    %v100 = vsub.s32 0, %v99
    %v101 = vrot.slane %v60, %v100
    %v103 = vadd.f32 %v95, %v101
    %v104 = vadd.f32 %v96, %v101
    %v105 = vpack.c.bf16 %v104, %v103
    %v106 = vld [vmem:[%s1] sm:$0xf]
    %v107 = vld [vmem:[%s1 + $0x4] sm:$0xf]
    %v108 = vld [vmem:[%s1 + $0x8] sm:$0xf]
    %v109 = vld [vmem:[%s1 + $0xc] sm:$0xf]
    %v114 = vunpack.c.l.b16 %v106
    %v115 = vunpack.c.l.b16 %v107
    %v116 = vunpack.c.l.b16 %v108
    %v117 = vunpack.c.l.b16 %v109
    %v118 = vpack.c.b16 %v115, %v114
    %v119 = vpack.c.b16 %v117, %v116
    %v123 = vsel %vm61, %v105, 0
    %125 = vmatprep.subr.bf16.mxu0 0
    %126 = vmatpush1.bf16.msra.mxu0 0
    %127 = vmatprep.subr.bf16.mxu0 0
    %128 = vmatpush1.bf16.msra.mxu0 0
    %129 = vmatprep.subr.bf16.mxu0 0
    %130 = vmatpush1.bf16.msra.mxu0 0
    %131 = vmatprep.subr.bf16.mxu0 0
    %132 = vmatpush1.bf16.msra.mxu0 0
    %133 = vmatprep.subr.bf16.mxu0 0
    %134 = vmatpush1.bf16.msra.mxu0 0
    %135 = vmatprep.subr.bf16.mxu0 0
    %136 = vmatpush1.bf16.msra.mxu0 0
    %137 = vmatprep.subr.bf16.mxu0 0
    %138 = vmatpush1.bf16.msra.mxu0 %v119
    %139 = vmatprep.subr.bf16.mxu0 0
    %140 = vmatpush1.bf16.msra.mxu0 %v118
    %141 = vmatprep.subr.bf16.mxu0 0
    %142 = vmatpush2.bf16.msra.mxu0 0
    %143 = vmatprep.subr.bf16.mxu0 0
    %144 = vmatpush2.bf16.msra.mxu0 0
    %145 = vmatprep.subr.bf16.mxu0 0
    %146 = vmatpush2.bf16.msra.mxu0 0
    %147 = vmatprep.subr.bf16.mxu0 0
    %148 = vmatpush2.bf16.msra.mxu0 0
    %149 = vmatprep.subr.bf16.mxu0 0
    %150 = vmatpush2.bf16.msra.mxu0 0
    %151 = vmatprep.subr.bf16.mxu0 0
    %152 = vmatpush2.bf16.msra.mxu0 0
    %153 = vmatprep.subr.bf16.mxu0 0
    %154 = vmatpush2.bf16.msra.mxu0 0
    %155 = vmatprep.subr.bf16.mxu0 0
    %156 = vmatpush2.bf16.msra.mxu0 0
    %157 = vmatprep.mubr.bf16.mxu0 0
    %158 = vmatmul.mubr.bf16.gmra.mxu0 %v123
    %v159 = vpop.f32.mrf.mxu0
    %v160 = vadd.f32 0.0, %v159
    %v161 = vpop.f32.mrf.mxu0
    %v162 = vpop.f32.mrf.mxu0
    %v163 = vadd.f32 0.0, %v162
    %v164 = vpop.f32.mrf.mxu0
    %165 = vdwg.mxu0
    %v166 = vmul.f32 %v160, 0.35355338
    %v167 = vmul.f32 %v163, 0.35355338
    %v168 = vlaneseq
    %v169 = vshrl.u32 %v168, 7
    %v170 = vlaneseq
    %v171 = vand.u32 %v170, 127
    %vm172 = vcmp.gt.s32.totalorder %v171, %v169
    %v173 = vsel %vm172, -inf, 0.0
    %v174 = vpack.c.bf16 %v166, %v166
    %v175 = vpack.c.bf16 %v167, %v167
    %v176 = vpack.c.bf16 %v160, %v160
    %v177 = vpack.c.bf16 %v163, %v163
    %179 = vrot.lane.b32.xlu0 %v176, 96
    %v180 = vpop.permute.xlu0 %179
    %vm181 = vcmask 64512
    %v183 = vsel %vm181, %v174, 0
    %v186 = vsel %vm181, %v180, 0
    %188 = vmatprep.subr.bf16.mxu0 0
    %189 = vmatpush1.bf16.xpose.msra.mxu0 0
    %190 = vmatprep.subr.bf16.mxu0 0
    %191 = vmatpush1.bf16.xpose.msra.mxu0 0
    %192 = vmatprep.subr.bf16.mxu0 0
    %193 = vmatpush1.bf16.xpose.msra.mxu0 0
    %194 = vmatprep.subr.bf16.mxu0 0
    %195 = vmatpush1.bf16.xpose.msra.mxu0 0
    %196 = vmatprep.subr.bf16.mxu0 0
    %197 = vmatpush1.bf16.xpose.msra.mxu0 0
    %198 = vmatprep.subr.bf16.mxu0 0
    %199 = vmatpush1.bf16.xpose.msra.mxu0 0
    %200 = vmatprep.subr.bf16.mxu0 0
    %201 = vmatpush1.bf16.xpose.msra.mxu0 0
    %202 = vmatprep.subr.bf16.mxu0 0
    %203 = vmatpush1.bf16.xpose.msra.mxu0 %v186
    %204 = vmatprep.subr.bf16.mxu0 0
    %205 = vmatpush2.bf16.xpose.msra.mxu0 0
    %206 = vmatprep.subr.bf16.mxu0 0
    %207 = vmatpush2.bf16.xpose.msra.mxu0 0
    %208 = vmatprep.subr.bf16.mxu0 0
    %209 = vmatpush2.bf16.xpose.msra.mxu0 0
    %210 = vmatprep.subr.bf16.mxu0 0
    %211 = vmatpush2.bf16.xpose.msra.mxu0 0
    %212 = vmatprep.subr.bf16.mxu0 0
    %213 = vmatpush2.bf16.xpose.msra.mxu0 0
    %214 = vmatprep.subr.bf16.mxu0 0
    %215 = vmatpush2.bf16.xpose.msra.mxu0 0
    %216 = vmatprep.subr.bf16.mxu0 0
    %217 = vmatpush2.bf16.xpose.msra.mxu0 0
    %218 = vmatprep.subr.bf16.mxu0 0
    %219 = vmatpush2.bf16.xpose.msra.mxu0 0
    %220 = vmatprep.mubr.bf16.mxu0 0
    %221 = vmatmul.mubr.bf16.gmra.mxu0 %v183
    %v222 = vpop.f32.mrf.mxu0
    %v223 = vadd.f32 %v173, %v222
    %v224 = vpop.f32.mrf.mxu0
    %v225 = vpop.f32.mrf.mxu0
    %v226 = vpop.f32.mrf.mxu0
    %227 = vdwg.mxu0
    %229 = vrot.lane.b32.xlu0 %v177, 96
    %v230 = vpop.permute.xlu0 %229
    %v232 = vsel %vm181, %v175, 0
    %v235 = vsel %vm181, %v230, 0
    %237 = vmatprep.subr.bf16.mxu0 0
    %238 = vmatpush1.bf16.xpose.msra.mxu0 0
    %239 = vmatprep.subr.bf16.mxu0 0
    %240 = vmatpush1.bf16.xpose.msra.mxu0 0
    %241 = vmatprep.subr.bf16.mxu0 0
    %242 = vmatpush1.bf16.xpose.msra.mxu0 0
    %243 = vmatprep.subr.bf16.mxu0 0
    %244 = vmatpush1.bf16.xpose.msra.mxu0 0
    %245 = vmatprep.subr.bf16.mxu0 0
    %246 = vmatpush1.bf16.xpose.msra.mxu0 0
    %247 = vmatprep.subr.bf16.mxu0 0
    %248 = vmatpush1.bf16.xpose.msra.mxu0 0
    %249 = vmatprep.subr.bf16.mxu0 0
    %250 = vmatpush1.bf16.xpose.msra.mxu0 0
    %251 = vmatprep.subr.bf16.mxu0 0
    %252 = vmatpush1.bf16.xpose.msra.mxu0 %v235
    %253 = vmatprep.subr.bf16.mxu0 0
    %254 = vmatpush2.bf16.xpose.msra.mxu0 0
    %255 = vmatprep.subr.bf16.mxu0 0
    %256 = vmatpush2.bf16.xpose.msra.mxu0 0
    %257 = vmatprep.subr.bf16.mxu0 0
    %258 = vmatpush2.bf16.xpose.msra.mxu0 0
    %259 = vmatprep.subr.bf16.mxu0 0
    %260 = vmatpush2.bf16.xpose.msra.mxu0 0
    %261 = vmatprep.subr.bf16.mxu0 0
    %262 = vmatpush2.bf16.xpose.msra.mxu0 0
    %263 = vmatprep.subr.bf16.mxu0 0
    %264 = vmatpush2.bf16.xpose.msra.mxu0 0
    %265 = vmatprep.subr.bf16.mxu0 0
    %266 = vmatpush2.bf16.xpose.msra.mxu0 0
    %267 = vmatprep.subr.bf16.mxu0 0
    %268 = vmatpush2.bf16.xpose.msra.mxu0 0
    %269 = vmatprep.mubr.bf16.mxu0 0
    %270 = vmatmul.mubr.bf16.gmra.mxu0 %v232
    %v271 = vpop.f32.mrf.mxu0
    %v272 = vadd.f32 %v173, %v271
    %v273 = vpop.f32.mrf.mxu0
    %v274 = vpop.f32.mrf.mxu0
    %v275 = vpop.f32.mrf.mxu0
    %276 = vdwg.mxu0
    %v277 = vsel %vm181, %v223, -inf
    %278 = vmax.xlane.f32.xlu0 %v277
    %v279 = vpop.xlane.xlu0 %278
    %v280 = vsel %vm181, %v272, -inf
    %281 = vmax.xlane.f32.xlu0 %v280
    %v282 = vpop.xlane.xlu0 %281
    %v283 = vsub.f32 %v223, %v279
    %v284 = vsub.f32 %v272, %v282
    %v285 = vmul.f32 %v283, 1.442695
    %v286 = vpow.pop %v285
    %v287 = vmul.f32 %v284, 1.442695
    %v288 = vpow.pop %v287
    %v289 = vsel %vm181, %v286, 0.0
    %290 = vadd.xlane.f32.xlu0 %v289
    %v291 = vpop.xlane.xlu0 %290
    %v292 = vsel %vm181, %v288, 0.0
    %293 = vadd.xlane.f32.xlu0 %v292
    %v294 = vpop.xlane.xlu0 %293
    %v295 = vrcp.pop %v291
    %v296 = vrcp.pop %v294
    %v297 = vmul.f32 %v286, %v295
    %v298 = vmul.f32 %v288, %v296
    %v299 = vpack.c.bf16 %v297, %v297
    %v300 = vpack.c.bf16 %v298, %v298
    %301 = vrot.lane.b32.xlu0 %v176, 64
    %v302 = vpop.permute.xlu0 %301
    %v304 = vsel %vm181, %v299, 0
    %vm306 = vcmask 1043456
    %v308 = vsel %vm306, %v302, 0
    %310 = vmatprep.subr.bf16.mxu0 0
    %311 = vmatpush1.bf16.msra.mxu0 0
    %312 = vmatprep.subr.bf16.mxu0 0
    %313 = vmatpush1.bf16.msra.mxu0 0
    %314 = vmatprep.subr.bf16.mxu0 0
    %315 = vmatpush1.bf16.msra.mxu0 0
    %316 = vmatprep.subr.bf16.mxu0 0
    %317 = vmatpush1.bf16.msra.mxu0 0
    %318 = vmatprep.subr.bf16.mxu0 0
    %319 = vmatpush1.bf16.msra.mxu0 0
    %320 = vmatprep.subr.bf16.mxu0 0
    %321 = vmatpush1.bf16.msra.mxu0 0
    %322 = vmatprep.subr.bf16.mxu0 0
    %323 = vmatpush1.bf16.msra.mxu0 0
    %324 = vmatprep.subr.bf16.mxu0 0
    %325 = vmatpush1.bf16.msra.mxu0 %v308
    %326 = vmatprep.subr.bf16.mxu0 0
    %327 = vmatpush2.bf16.msra.mxu0 0
    %328 = vmatprep.subr.bf16.mxu0 0
    %329 = vmatpush2.bf16.msra.mxu0 0
    %330 = vmatprep.subr.bf16.mxu0 0
    %331 = vmatpush2.bf16.msra.mxu0 0
    %332 = vmatprep.subr.bf16.mxu0 0
    %333 = vmatpush2.bf16.msra.mxu0 0
    %334 = vmatprep.subr.bf16.mxu0 0
    %335 = vmatpush2.bf16.msra.mxu0 0
    %336 = vmatprep.subr.bf16.mxu0 0
    %337 = vmatpush2.bf16.msra.mxu0 0
    %338 = vmatprep.subr.bf16.mxu0 0
    %339 = vmatpush2.bf16.msra.mxu0 0
    %340 = vmatprep.subr.bf16.mxu0 0
    %341 = vmatpush2.bf16.msra.mxu0 0
    %342 = vmatprep.mubr.bf16.mxu0 0
    %343 = vmatmul.mubr.bf16.gmra.mxu0 %v304
    %v344 = vpop.f32.mrf.mxu0
    %v345 = vadd.f32 0.0, %v344
    %v346 = vpop.f32.mrf.mxu0
    %v347 = vpop.f32.mrf.mxu0
    %v348 = vpop.f32.mrf.mxu0
    %349 = vdwg.mxu0
    %350 = vrot.lane.b32.xlu0 %v177, 64
    %v351 = vpop.permute.xlu0 %350
    %v353 = vsel %vm181, %v300, 0
    %v356 = vsel %vm306, %v351, 0
    %358 = vmatprep.subr.bf16.mxu0 0
    %359 = vmatpush1.bf16.msra.mxu0 0
    %360 = vmatprep.subr.bf16.mxu0 0
    %361 = vmatpush1.bf16.msra.mxu0 0
    %362 = vmatprep.subr.bf16.mxu0 0
    %363 = vmatpush1.bf16.msra.mxu0 0
    %364 = vmatprep.subr.bf16.mxu0 0
    %365 = vmatpush1.bf16.msra.mxu0 0
    %366 = vmatprep.subr.bf16.mxu0 0
    %367 = vmatpush1.bf16.msra.mxu0 0
    %368 = vmatprep.subr.bf16.mxu0 0
    %369 = vmatpush1.bf16.msra.mxu0 0
    %370 = vmatprep.subr.bf16.mxu0 0
    %371 = vmatpush1.bf16.msra.mxu0 0
    %372 = vmatprep.subr.bf16.mxu0 0
    %373 = vmatpush1.bf16.msra.mxu0 %v356
    %374 = vmatprep.subr.bf16.mxu0 0
    %375 = vmatpush2.bf16.msra.mxu0 0
    %376 = vmatprep.subr.bf16.mxu0 0
    %377 = vmatpush2.bf16.msra.mxu0 0
    %378 = vmatprep.subr.bf16.mxu0 0
    %379 = vmatpush2.bf16.msra.mxu0 0
    %380 = vmatprep.subr.bf16.mxu0 0
    %381 = vmatpush2.bf16.msra.mxu0 0
    %382 = vmatprep.subr.bf16.mxu0 0
    %383 = vmatpush2.bf16.msra.mxu0 0
    %384 = vmatprep.subr.bf16.mxu0 0
    %385 = vmatpush2.bf16.msra.mxu0 0
    %386 = vmatprep.subr.bf16.mxu0 0
    %387 = vmatpush2.bf16.msra.mxu0 0
    %388 = vmatprep.subr.bf16.mxu0 0
    %389 = vmatpush2.bf16.msra.mxu0 0
    %390 = vmatprep.mubr.bf16.mxu0 0
    %391 = vmatmul.mubr.bf16.gmra.mxu0 %v353
    %v392 = vpop.f32.mrf.mxu0
    %v393 = vadd.f32 0.0, %v392
    %v394 = vpop.f32.mrf.mxu0
    %v395 = vpop.f32.mrf.mxu0
    %v396 = vpop.f32.mrf.mxu0
    %397 = vdwg.mxu0
    %398 = vst.msk [vmem:[#allocation2] sm:$0xff] %vm181, %v345
    %399 = vst.msk [vmem:[#allocation2 + $0x8] sm:$0xff] %vm181, %v393
    %401 = vrot.lane.b32.xlu0 %v174, 120
    %v402 = vpop.permute.xlu0 %401
    %403 = vrot.lane.b32.xlu0 %v176, 88
    %v404 = vpop.permute.xlu0 %403
    %v406 = vsel %vm181, %v402, 0
    %v409 = vsel %vm181, %v404, 0
    %411 = vmatprep.subr.bf16.mxu0 0
    %412 = vmatpush1.bf16.xpose.msra.mxu0 0
    %413 = vmatprep.subr.bf16.mxu0 0
    %414 = vmatpush1.bf16.xpose.msra.mxu0 0
    %415 = vmatprep.subr.bf16.mxu0 0
    %416 = vmatpush1.bf16.xpose.msra.mxu0 0
    %417 = vmatprep.subr.bf16.mxu0 0
    %418 = vmatpush1.bf16.xpose.msra.mxu0 0
    %419 = vmatprep.subr.bf16.mxu0 0
    %420 = vmatpush1.bf16.xpose.msra.mxu0 0
    %421 = vmatprep.subr.bf16.mxu0 0
    %422 = vmatpush1.bf16.xpose.msra.mxu0 0
    %423 = vmatprep.subr.bf16.mxu0 0
    %424 = vmatpush1.bf16.xpose.msra.mxu0 0
    %425 = vmatprep.subr.bf16.mxu0 0
    %426 = vmatpush1.bf16.xpose.msra.mxu0 %v409
    %427 = vmatprep.subr.bf16.mxu0 0
    %428 = vmatpush2.bf16.xpose.msra.mxu0 0
    %429 = vmatprep.subr.bf16.mxu0 0
    %430 = vmatpush2.bf16.xpose.msra.mxu0 0
    %431 = vmatprep.subr.bf16.mxu0 0
    %432 = vmatpush2.bf16.xpose.msra.mxu0 0
    %433 = vmatprep.subr.bf16.mxu0 0
    %434 = vmatpush2.bf16.xpose.msra.mxu0 0
    %435 = vmatprep.subr.bf16.mxu0 0
    %436 = vmatpush2.bf16.xpose.msra.mxu0 0
    %437 = vmatprep.subr.bf16.mxu0 0
    %438 = vmatpush2.bf16.xpose.msra.mxu0 0
    %439 = vmatprep.subr.bf16.mxu0 0
    %440 = vmatpush2.bf16.xpose.msra.mxu0 0
    %441 = vmatprep.subr.bf16.mxu0 0
    %442 = vmatpush2.bf16.xpose.msra.mxu0 0
    %443 = vmatprep.mubr.bf16.mxu0 0
    %444 = vmatmul.mubr.bf16.gmra.mxu0 %v406
    %v445 = vpop.f32.mrf.mxu0
    %v446 = vadd.f32 %v173, %v445
    %v447 = vpop.f32.mrf.mxu0
    %v448 = vpop.f32.mrf.mxu0
    %v449 = vpop.f32.mrf.mxu0
    %450 = vdwg.mxu0
    %452 = vrot.lane.b32.xlu0 %v175, 120
    %v453 = vpop.permute.xlu0 %452
    %454 = vrot.lane.b32.xlu0 %v177, 88
    %v455 = vpop.permute.xlu0 %454
    %v457 = vsel %vm181, %v453, 0
    %v460 = vsel %vm181, %v455, 0
    %462 = vmatprep.subr.bf16.mxu0 0
    %463 = vmatpush1.bf16.xpose.msra.mxu0 0
    %464 = vmatprep.subr.bf16.mxu0 0
    %465 = vmatpush1.bf16.xpose.msra.mxu0 0
    %466 = vmatprep.subr.bf16.mxu0 0
    %467 = vmatpush1.bf16.xpose.msra.mxu0 0
    %468 = vmatprep.subr.bf16.mxu0 0
    %469 = vmatpush1.bf16.xpose.msra.mxu0 0
    %470 = vmatprep.subr.bf16.mxu0 0
    %471 = vmatpush1.bf16.xpose.msra.mxu0 0
    %472 = vmatprep.subr.bf16.mxu0 0
    %473 = vmatpush1.bf16.xpose.msra.mxu0 0
    %474 = vmatprep.subr.bf16.mxu0 0
    %475 = vmatpush1.bf16.xpose.msra.mxu0 0
    %476 = vmatprep.subr.bf16.mxu0 0
    %477 = vmatpush1.bf16.xpose.msra.mxu0 %v460
    %478 = vmatprep.subr.bf16.mxu0 0
    %479 = vmatpush2.bf16.xpose.msra.mxu0 0
    %480 = vmatprep.subr.bf16.mxu0 0
    %481 = vmatpush2.bf16.xpose.msra.mxu0 0
    %482 = vmatprep.subr.bf16.mxu0 0
    %483 = vmatpush2.bf16.xpose.msra.mxu0 0
    %484 = vmatprep.subr.bf16.mxu0 0
    %485 = vmatpush2.bf16.xpose.msra.mxu0 0
    %486 = vmatprep.subr.bf16.mxu0 0
    %487 = vmatpush2.bf16.xpose.msra.mxu0 0
    %488 = vmatprep.subr.bf16.mxu0 0
    %489 = vmatpush2.bf16.xpose.msra.mxu0 0
    %490 = vmatprep.subr.bf16.mxu0 0
    %491 = vmatpush2.bf16.xpose.msra.mxu0 0
    %492 = vmatprep.subr.bf16.mxu0 0
    %493 = vmatpush2.bf16.xpose.msra.mxu0 0
    %494 = vmatprep.mubr.bf16.mxu0 0
    %495 = vmatmul.mubr.bf16.gmra.mxu0 %v457
    %v496 = vpop.f32.mrf.mxu0
    %v497 = vadd.f32 %v173, %v496
    %v498 = vpop.f32.mrf.mxu0
    %v499 = vpop.f32.mrf.mxu0
    %v500 = vpop.f32.mrf.mxu0
    %501 = vdwg.mxu0
    %v502 = vsel %vm181, %v446, -inf
    %503 = vmax.xlane.f32.xlu0 %v502
    %v504 = vpop.xlane.xlu0 %503
    %v505 = vsel %vm181, %v497, -inf
    %506 = vmax.xlane.f32.xlu0 %v505
    %v507 = vpop.xlane.xlu0 %506
    %v508 = vsub.f32 %v446, %v504
    %v509 = vsub.f32 %v497, %v507
    %v510 = vmul.f32 %v508, 1.442695
    %v511 = vpow.pop %v510
    %v512 = vmul.f32 %v509, 1.442695
    %v513 = vpow.pop %v512
    %v514 = vsel %vm181, %v511, 0.0
    %515 = vadd.xlane.f32.xlu0 %v514
    %v516 = vpop.xlane.xlu0 %515
    %v517 = vsel %vm181, %v513, 0.0
    %518 = vadd.xlane.f32.xlu0 %v517
    %v519 = vpop.xlane.xlu0 %518
    %v520 = vrcp.pop %v516
    %v521 = vrcp.pop %v519
    %v522 = vmul.f32 %v511, %v520
    %v523 = vmul.f32 %v513, %v521
    %v524 = vpack.c.bf16 %v522, %v522
    %v525 = vpack.c.bf16 %v523, %v523
    %526 = vrot.lane.b32.xlu0 %v176, 56
    %v527 = vpop.permute.xlu0 %526
    %v529 = vsel %vm181, %v524, 0
    %v532 = vsel %vm306, %v527, 0
    %534 = vmatprep.subr.bf16.mxu0 0
    %535 = vmatpush1.bf16.msra.mxu0 0
    %536 = vmatprep.subr.bf16.mxu0 0
    %537 = vmatpush1.bf16.msra.mxu0 0
    %538 = vmatprep.subr.bf16.mxu0 0
    %539 = vmatpush1.bf16.msra.mxu0 0
    %540 = vmatprep.subr.bf16.mxu0 0
    %541 = vmatpush1.bf16.msra.mxu0 0
    %542 = vmatprep.subr.bf16.mxu0 0
    %543 = vmatpush1.bf16.msra.mxu0 0
    %544 = vmatprep.subr.bf16.mxu0 0
    %545 = vmatpush1.bf16.msra.mxu0 0
    %546 = vmatprep.subr.bf16.mxu0 0
    %547 = vmatpush1.bf16.msra.mxu0 0
    %548 = vmatprep.subr.bf16.mxu0 0
    %549 = vmatpush1.bf16.msra.mxu0 %v532
    %550 = vmatprep.subr.bf16.mxu0 0
    %551 = vmatpush2.bf16.msra.mxu0 0
    %552 = vmatprep.subr.bf16.mxu0 0
    %553 = vmatpush2.bf16.msra.mxu0 0
    %554 = vmatprep.subr.bf16.mxu0 0
    %555 = vmatpush2.bf16.msra.mxu0 0
    %556 = vmatprep.subr.bf16.mxu0 0
    %557 = vmatpush2.bf16.msra.mxu0 0
    %558 = vmatprep.subr.bf16.mxu0 0
    %559 = vmatpush2.bf16.msra.mxu0 0
    %560 = vmatprep.subr.bf16.mxu0 0
    %561 = vmatpush2.bf16.msra.mxu0 0
    %562 = vmatprep.subr.bf16.mxu0 0
    %563 = vmatpush2.bf16.msra.mxu0 0
    %564 = vmatprep.subr.bf16.mxu0 0
    %565 = vmatpush2.bf16.msra.mxu0 0
    %566 = vmatprep.mubr.bf16.mxu0 0
    %567 = vmatmul.mubr.bf16.gmra.mxu0 %v529
    %v568 = vpop.f32.mrf.mxu0
    %v569 = vadd.f32 0.0, %v568
    %v570 = vpop.f32.mrf.mxu0
    %v571 = vpop.f32.mrf.mxu0
    %v572 = vpop.f32.mrf.mxu0
    %573 = vdwg.mxu0
    %574 = vrot.lane.b32.xlu0 %v177, 56
    %v575 = vpop.permute.xlu0 %574
    %v577 = vsel %vm181, %v525, 0
    %v580 = vsel %vm306, %v575, 0
    %582 = vmatprep.subr.bf16.mxu0 0
    %583 = vmatpush1.bf16.msra.mxu0 0
    %584 = vmatprep.subr.bf16.mxu0 0
    %585 = vmatpush1.bf16.msra.mxu0 0
    %586 = vmatprep.subr.bf16.mxu0 0
    %587 = vmatpush1.bf16.msra.mxu0 0
    %588 = vmatprep.subr.bf16.mxu0 0
    %589 = vmatpush1.bf16.msra.mxu0 0
    %590 = vmatprep.subr.bf16.mxu0 0
    %591 = vmatpush1.bf16.msra.mxu0 0
    %592 = vmatprep.subr.bf16.mxu0 0
    %593 = vmatpush1.bf16.msra.mxu0 0
    %594 = vmatprep.subr.bf16.mxu0 0
    %595 = vmatpush1.bf16.msra.mxu0 0
    %596 = vmatprep.subr.bf16.mxu0 0
    %597 = vmatpush1.bf16.msra.mxu0 %v580
    %598 = vmatprep.subr.bf16.mxu0 0
    %599 = vmatpush2.bf16.msra.mxu0 0
    %600 = vmatprep.subr.bf16.mxu0 0
    %601 = vmatpush2.bf16.msra.mxu0 0
    %602 = vmatprep.subr.bf16.mxu0 0
    %603 = vmatpush2.bf16.msra.mxu0 0
    %604 = vmatprep.subr.bf16.mxu0 0
    %605 = vmatpush2.bf16.msra.mxu0 0
    %606 = vmatprep.subr.bf16.mxu0 0
    %607 = vmatpush2.bf16.msra.mxu0 0
    %608 = vmatprep.subr.bf16.mxu0 0
    %609 = vmatpush2.bf16.msra.mxu0 0
    %610 = vmatprep.subr.bf16.mxu0 0
    %611 = vmatpush2.bf16.msra.mxu0 0
    %612 = vmatprep.subr.bf16.mxu0 0
    %613 = vmatpush2.bf16.msra.mxu0 0
    %614 = vmatprep.mubr.bf16.mxu0 0
    %615 = vmatmul.mubr.bf16.gmra.mxu0 %v577
    %v616 = vpop.f32.mrf.mxu0
    %v617 = vadd.f32 0.0, %v616
    %v618 = vpop.f32.mrf.mxu0
    %v619 = vpop.f32.mrf.mxu0
    %v620 = vpop.f32.mrf.mxu0
    %621 = vdwg.mxu0
    %624 = vrot.lane.b32.xlu0 %v569, 8
    %v625 = vpop.permute.xlu0 %624
    %626 = vrot.lane.b32.xlu0 %v617, 8
    %v627 = vpop.permute.xlu0 %626
    %vm630 = vcmask 130112
    %631 = vst.msk [vmem:[#allocation2] sm:$0xff] %vm630, %v625
    %632 = vst.msk [vmem:[#allocation2 + $0x8] sm:$0xff] %vm630, %v627
    %633 = vrot.lane.b32.xlu0 %v174, 112
    %v634 = vpop.permute.xlu0 %633
    %635 = vrot.lane.b32.xlu0 %v176, 80
    %v636 = vpop.permute.xlu0 %635
    %v638 = vsel %vm181, %v634, 0
    %v641 = vsel %vm181, %v636, 0
    %643 = vmatprep.subr.bf16.mxu0 0
    %644 = vmatpush1.bf16.xpose.msra.mxu0 0
    %645 = vmatprep.subr.bf16.mxu0 0
    %646 = vmatpush1.bf16.xpose.msra.mxu0 0
    %647 = vmatprep.subr.bf16.mxu0 0
    %648 = vmatpush1.bf16.xpose.msra.mxu0 0
    %649 = vmatprep.subr.bf16.mxu0 0
    %650 = vmatpush1.bf16.xpose.msra.mxu0 0
    %651 = vmatprep.subr.bf16.mxu0 0
    %652 = vmatpush1.bf16.xpose.msra.mxu0 0
    %653 = vmatprep.subr.bf16.mxu0 0
    %654 = vmatpush1.bf16.xpose.msra.mxu0 0
    %655 = vmatprep.subr.bf16.mxu0 0
    %656 = vmatpush1.bf16.xpose.msra.mxu0 0
    %657 = vmatprep.subr.bf16.mxu0 0
    %658 = vmatpush1.bf16.xpose.msra.mxu0 %v641
    %659 = vmatprep.subr.bf16.mxu0 0
    %660 = vmatpush2.bf16.xpose.msra.mxu0 0
    %661 = vmatprep.subr.bf16.mxu0 0
    %662 = vmatpush2.bf16.xpose.msra.mxu0 0
    %663 = vmatprep.subr.bf16.mxu0 0
    %664 = vmatpush2.bf16.xpose.msra.mxu0 0
    %665 = vmatprep.subr.bf16.mxu0 0
    %666 = vmatpush2.bf16.xpose.msra.mxu0 0
    %667 = vmatprep.subr.bf16.mxu0 0
    %668 = vmatpush2.bf16.xpose.msra.mxu0 0
    %669 = vmatprep.subr.bf16.mxu0 0
    %670 = vmatpush2.bf16.xpose.msra.mxu0 0
    %671 = vmatprep.subr.bf16.mxu0 0
    %672 = vmatpush2.bf16.xpose.msra.mxu0 0
    %673 = vmatprep.subr.bf16.mxu0 0
    %674 = vmatpush2.bf16.xpose.msra.mxu0 0
    %675 = vmatprep.mubr.bf16.mxu0 0
    %676 = vmatmul.mubr.bf16.gmra.mxu0 %v638
    %v677 = vpop.f32.mrf.mxu0
    %v678 = vadd.f32 %v173, %v677
    %v679 = vpop.f32.mrf.mxu0
    %v680 = vpop.f32.mrf.mxu0
    %v681 = vpop.f32.mrf.mxu0
    %682 = vdwg.mxu0
    %683 = vrot.lane.b32.xlu0 %v175, 112
    %v684 = vpop.permute.xlu0 %683
    %685 = vrot.lane.b32.xlu0 %v177, 80
    %v686 = vpop.permute.xlu0 %685
    %v688 = vsel %vm181, %v684, 0
    %v691 = vsel %vm181, %v686, 0
    %693 = vmatprep.subr.bf16.mxu0 0
    %694 = vmatpush1.bf16.xpose.msra.mxu0 0
    %695 = vmatprep.subr.bf16.mxu0 0
    %696 = vmatpush1.bf16.xpose.msra.mxu0 0
    %697 = vmatprep.subr.bf16.mxu0 0
    %698 = vmatpush1.bf16.xpose.msra.mxu0 0
    %699 = vmatprep.subr.bf16.mxu0 0
    %700 = vmatpush1.bf16.xpose.msra.mxu0 0
    %701 = vmatprep.subr.bf16.mxu0 0
    %702 = vmatpush1.bf16.xpose.msra.mxu0 0
    %703 = vmatprep.subr.bf16.mxu0 0
    %704 = vmatpush1.bf16.xpose.msra.mxu0 0
    %705 = vmatprep.subr.bf16.mxu0 0
    %706 = vmatpush1.bf16.xpose.msra.mxu0 0
    %707 = vmatprep.subr.bf16.mxu0 0
    %708 = vmatpush1.bf16.xpose.msra.mxu0 %v691
    %709 = vmatprep.subr.bf16.mxu0 0
    %710 = vmatpush2.bf16.xpose.msra.mxu0 0
    %711 = vmatprep.subr.bf16.mxu0 0
    %712 = vmatpush2.bf16.xpose.msra.mxu0 0
    %713 = vmatprep.subr.bf16.mxu0 0
    %714 = vmatpush2.bf16.xpose.msra.mxu0 0
    %715 = vmatprep.subr.bf16.mxu0 0
    %716 = vmatpush2.bf16.xpose.msra.mxu0 0
    %717 = vmatprep.subr.bf16.mxu0 0
    %718 = vmatpush2.bf16.xpose.msra.mxu0 0
    %719 = vmatprep.subr.bf16.mxu0 0
    %720 = vmatpush2.bf16.xpose.msra.mxu0 0
    %721 = vmatprep.subr.bf16.mxu0 0
    %722 = vmatpush2.bf16.xpose.msra.mxu0 0
    %723 = vmatprep.subr.bf16.mxu0 0
    %724 = vmatpush2.bf16.xpose.msra.mxu0 0
    %725 = vmatprep.mubr.bf16.mxu0 0
    %726 = vmatmul.mubr.bf16.gmra.mxu0 %v688
    %v727 = vpop.f32.mrf.mxu0
    %v728 = vadd.f32 %v173, %v727
    %v729 = vpop.f32.mrf.mxu0
    %v730 = vpop.f32.mrf.mxu0
    %v731 = vpop.f32.mrf.mxu0
    %732 = vdwg.mxu0
    %v733 = vsel %vm181, %v678, -inf
    %734 = vmax.xlane.f32.xlu0 %v733
    %v735 = vpop.xlane.xlu0 %734
    %v736 = vsel %vm181, %v728, -inf
    %737 = vmax.xlane.f32.xlu0 %v736
    %v738 = vpop.xlane.xlu0 %737
    %v739 = vsub.f32 %v678, %v735
    %v740 = vsub.f32 %v728, %v738
    %v741 = vmul.f32 %v739, 1.442695
    %v742 = vpow.pop %v741
    %v743 = vmul.f32 %v740, 1.442695
    %v744 = vpow.pop %v743
    %v745 = vsel %vm181, %v742, 0.0
    %746 = vadd.xlane.f32.xlu0 %v745
    %v747 = vpop.xlane.xlu0 %746
    %v748 = vsel %vm181, %v744, 0.0
    %749 = vadd.xlane.f32.xlu0 %v748
    %v750 = vpop.xlane.xlu0 %749
    %v751 = vrcp.pop %v747
    %v752 = vrcp.pop %v750
    %v753 = vmul.f32 %v742, %v751
    %v754 = vmul.f32 %v744, %v752
    %v755 = vpack.c.bf16 %v753, %v753
    %v756 = vpack.c.bf16 %v754, %v754
    %757 = vrot.lane.b32.xlu0 %v176, 48
    %v758 = vpop.permute.xlu0 %757
    %v760 = vsel %vm181, %v755, 0
    %v763 = vsel %vm306, %v758, 0
    %765 = vmatprep.subr.bf16.mxu0 0
    %766 = vmatpush1.bf16.msra.mxu0 0
    %767 = vmatprep.subr.bf16.mxu0 0
    %768 = vmatpush1.bf16.msra.mxu0 0
    %769 = vmatprep.subr.bf16.mxu0 0
    %770 = vmatpush1.bf16.msra.mxu0 0
    %771 = vmatprep.subr.bf16.mxu0 0
    %772 = vmatpush1.bf16.msra.mxu0 0
    %773 = vmatprep.subr.bf16.mxu0 0
    %774 = vmatpush1.bf16.msra.mxu0 0
    %775 = vmatprep.subr.bf16.mxu0 0
    %776 = vmatpush1.bf16.msra.mxu0 0
    %777 = vmatprep.subr.bf16.mxu0 0
    %778 = vmatpush1.bf16.msra.mxu0 0
    %779 = vmatprep.subr.bf16.mxu0 0
    %780 = vmatpush1.bf16.msra.mxu0 %v763
    %781 = vmatprep.subr.bf16.mxu0 0
    %782 = vmatpush2.bf16.msra.mxu0 0
    %783 = vmatprep.subr.bf16.mxu0 0
    %784 = vmatpush2.bf16.msra.mxu0 0
    %785 = vmatprep.subr.bf16.mxu0 0
    %786 = vmatpush2.bf16.msra.mxu0 0
    %787 = vmatprep.subr.bf16.mxu0 0
    %788 = vmatpush2.bf16.msra.mxu0 0
    %789 = vmatprep.subr.bf16.mxu0 0
    %790 = vmatpush2.bf16.msra.mxu0 0
    %791 = vmatprep.subr.bf16.mxu0 0
    %792 = vmatpush2.bf16.msra.mxu0 0
    %793 = vmatprep.subr.bf16.mxu0 0
    %794 = vmatpush2.bf16.msra.mxu0 0
    %795 = vmatprep.subr.bf16.mxu0 0
    %796 = vmatpush2.bf16.msra.mxu0 0
    %797 = vmatprep.mubr.bf16.mxu0 0
    %798 = vmatmul.mubr.bf16.gmra.mxu0 %v760
    %v799 = vpop.f32.mrf.mxu0
    %v800 = vadd.f32 0.0, %v799
    %v801 = vpop.f32.mrf.mxu0
    %v802 = vpop.f32.mrf.mxu0
    %v803 = vpop.f32.mrf.mxu0
    %804 = vdwg.mxu0
    %805 = vrot.lane.b32.xlu0 %v177, 48
    %v806 = vpop.permute.xlu0 %805
    %v808 = vsel %vm181, %v756, 0
    %v811 = vsel %vm306, %v806, 0
    %813 = vmatprep.subr.bf16.mxu0 0
    %814 = vmatpush1.bf16.msra.mxu0 0
    %815 = vmatprep.subr.bf16.mxu0 0
    %816 = vmatpush1.bf16.msra.mxu0 0
    %817 = vmatprep.subr.bf16.mxu0 0
    %818 = vmatpush1.bf16.msra.mxu0 0
    %819 = vmatprep.subr.bf16.mxu0 0
    %820 = vmatpush1.bf16.msra.mxu0 0
    %821 = vmatprep.subr.bf16.mxu0 0
    %822 = vmatpush1.bf16.msra.mxu0 0
    %823 = vmatprep.subr.bf16.mxu0 0
    %824 = vmatpush1.bf16.msra.mxu0 0
    %825 = vmatprep.subr.bf16.mxu0 0
    %826 = vmatpush1.bf16.msra.mxu0 0
    %827 = vmatprep.subr.bf16.mxu0 0
    %828 = vmatpush1.bf16.msra.mxu0 %v811
    %829 = vmatprep.subr.bf16.mxu0 0
    %830 = vmatpush2.bf16.msra.mxu0 0
    %831 = vmatprep.subr.bf16.mxu0 0
    %832 = vmatpush2.bf16.msra.mxu0 0
    %833 = vmatprep.subr.bf16.mxu0 0
    %834 = vmatpush2.bf16.msra.mxu0 0
    %835 = vmatprep.subr.bf16.mxu0 0
    %836 = vmatpush2.bf16.msra.mxu0 0
    %837 = vmatprep.subr.bf16.mxu0 0
    %838 = vmatpush2.bf16.msra.mxu0 0
    %839 = vmatprep.subr.bf16.mxu0 0
    %840 = vmatpush2.bf16.msra.mxu0 0
    %841 = vmatprep.subr.bf16.mxu0 0
    %842 = vmatpush2.bf16.msra.mxu0 0
    %843 = vmatprep.subr.bf16.mxu0 0
    %844 = vmatpush2.bf16.msra.mxu0 0
    %845 = vmatprep.mubr.bf16.mxu0 0
    %846 = vmatmul.mubr.bf16.gmra.mxu0 %v808
    %v847 = vpop.f32.mrf.mxu0
    %v848 = vadd.f32 0.0, %v847
    %v849 = vpop.f32.mrf.mxu0
    %v850 = vpop.f32.mrf.mxu0
    %v851 = vpop.f32.mrf.mxu0
    %852 = vdwg.mxu0
    %855 = vrot.lane.b32.xlu0 %v800, 16
    %v856 = vpop.permute.xlu0 %855
    %857 = vrot.lane.b32.xlu0 %v848, 16
    %v858 = vpop.permute.xlu0 %857
    %vm861 = vcmask 195712
    %862 = vst.msk [vmem:[#allocation2] sm:$0xff] %vm861, %v856
    %863 = vst.msk [vmem:[#allocation2 + $0x8] sm:$0xff] %vm861, %v858
    %864 = vrot.lane.b32.xlu0 %v174, 104
    %v865 = vpop.permute.xlu0 %864
    %866 = vrot.lane.b32.xlu0 %v176, 72
    %v867 = vpop.permute.xlu0 %866
    %v869 = vsel %vm181, %v865, 0
    %v872 = vsel %vm181, %v867, 0
    %874 = vmatprep.subr.bf16.mxu0 0
    %875 = vmatpush1.bf16.xpose.msra.mxu0 0
    %876 = vmatprep.subr.bf16.mxu0 0
    %877 = vmatpush1.bf16.xpose.msra.mxu0 0
    %878 = vmatprep.subr.bf16.mxu0 0
    %879 = vmatpush1.bf16.xpose.msra.mxu0 0
    %880 = vmatprep.subr.bf16.mxu0 0
    %881 = vmatpush1.bf16.xpose.msra.mxu0 0
    %882 = vmatprep.subr.bf16.mxu0 0
    %883 = vmatpush1.bf16.xpose.msra.mxu0 0
    %884 = vmatprep.subr.bf16.mxu0 0
    %885 = vmatpush1.bf16.xpose.msra.mxu0 0
    %886 = vmatprep.subr.bf16.mxu0 0
    %887 = vmatpush1.bf16.xpose.msra.mxu0 0
    %888 = vmatprep.subr.bf16.mxu0 0
    %889 = vmatpush1.bf16.xpose.msra.mxu0 %v872
    %890 = vmatprep.subr.bf16.mxu0 0
    %891 = vmatpush2.bf16.xpose.msra.mxu0 0
    %892 = vmatprep.subr.bf16.mxu0 0
    %893 = vmatpush2.bf16.xpose.msra.mxu0 0
    %894 = vmatprep.subr.bf16.mxu0 0
    %895 = vmatpush2.bf16.xpose.msra.mxu0 0
    %896 = vmatprep.subr.bf16.mxu0 0
    %897 = vmatpush2.bf16.xpose.msra.mxu0 0
    %898 = vmatprep.subr.bf16.mxu0 0
    %899 = vmatpush2.bf16.xpose.msra.mxu0 0
    %900 = vmatprep.subr.bf16.mxu0 0
    %901 = vmatpush2.bf16.xpose.msra.mxu0 0
    %902 = vmatprep.subr.bf16.mxu0 0
    %903 = vmatpush2.bf16.xpose.msra.mxu0 0
    %904 = vmatprep.subr.bf16.mxu0 0
    %905 = vmatpush2.bf16.xpose.msra.mxu0 0
    %906 = vmatprep.mubr.bf16.mxu0 0
    %907 = vmatmul.mubr.bf16.gmra.mxu0 %v869
    %v908 = vpop.f32.mrf.mxu0
    %v909 = vadd.f32 %v173, %v908
    %v910 = vpop.f32.mrf.mxu0
    %v911 = vpop.f32.mrf.mxu0
    %v912 = vpop.f32.mrf.mxu0
    %913 = vdwg.mxu0
    %914 = vrot.lane.b32.xlu0 %v175, 104
    %v915 = vpop.permute.xlu0 %914
    %916 = vrot.lane.b32.xlu0 %v177, 72
    %v917 = vpop.permute.xlu0 %916
    %v919 = vsel %vm181, %v915, 0
    %v922 = vsel %vm181, %v917, 0
    %924 = vmatprep.subr.bf16.mxu0 0
    %925 = vmatpush1.bf16.xpose.msra.mxu0 0
    %926 = vmatprep.subr.bf16.mxu0 0
    %927 = vmatpush1.bf16.xpose.msra.mxu0 0
    %928 = vmatprep.subr.bf16.mxu0 0
    %929 = vmatpush1.bf16.xpose.msra.mxu0 0
    %930 = vmatprep.subr.bf16.mxu0 0
    %931 = vmatpush1.bf16.xpose.msra.mxu0 0
    %932 = vmatprep.subr.bf16.mxu0 0
    %933 = vmatpush1.bf16.xpose.msra.mxu0 0
    %934 = vmatprep.subr.bf16.mxu0 0
    %935 = vmatpush1.bf16.xpose.msra.mxu0 0
    %936 = vmatprep.subr.bf16.mxu0 0
    %937 = vmatpush1.bf16.xpose.msra.mxu0 0
    %938 = vmatprep.subr.bf16.mxu0 0
    %939 = vmatpush1.bf16.xpose.msra.mxu0 %v922
    %940 = vmatprep.subr.bf16.mxu0 0
    %941 = vmatpush2.bf16.xpose.msra.mxu0 0
    %942 = vmatprep.subr.bf16.mxu0 0
    %943 = vmatpush2.bf16.xpose.msra.mxu0 0
    %944 = vmatprep.subr.bf16.mxu0 0
    %945 = vmatpush2.bf16.xpose.msra.mxu0 0
    %946 = vmatprep.subr.bf16.mxu0 0
    %947 = vmatpush2.bf16.xpose.msra.mxu0 0
    %948 = vmatprep.subr.bf16.mxu0 0
    %949 = vmatpush2.bf16.xpose.msra.mxu0 0
    %950 = vmatprep.subr.bf16.mxu0 0
    %951 = vmatpush2.bf16.xpose.msra.mxu0 0
    %952 = vmatprep.subr.bf16.mxu0 0
    %953 = vmatpush2.bf16.xpose.msra.mxu0 0
    %954 = vmatprep.subr.bf16.mxu0 0
    %955 = vmatpush2.bf16.xpose.msra.mxu0 0
    %956 = vmatprep.mubr.bf16.mxu0 0
    %957 = vmatmul.mubr.bf16.gmra.mxu0 %v919
    %v958 = vpop.f32.mrf.mxu0
    %v959 = vadd.f32 %v173, %v958
    %v960 = vpop.f32.mrf.mxu0
    %v961 = vpop.f32.mrf.mxu0
    %v962 = vpop.f32.mrf.mxu0
    %963 = vdwg.mxu0
    %v964 = vsel %vm181, %v909, -inf
    %965 = vmax.xlane.f32.xlu0 %v964
    %v966 = vpop.xlane.xlu0 %965
    %v967 = vsel %vm181, %v959, -inf
    %968 = vmax.xlane.f32.xlu0 %v967
    %v969 = vpop.xlane.xlu0 %968
    %v970 = vsub.f32 %v909, %v966
    %v971 = vsub.f32 %v959, %v969
    %v972 = vmul.f32 %v970, 1.442695
    %v973 = vpow.pop %v972
    %v974 = vmul.f32 %v971, 1.442695
    %v975 = vpow.pop %v974
    %v976 = vsel %vm181, %v973, 0.0
    %977 = vadd.xlane.f32.xlu0 %v976
    %v978 = vpop.xlane.xlu0 %977
    %v979 = vsel %vm181, %v975, 0.0
    %980 = vadd.xlane.f32.xlu0 %v979
    %v981 = vpop.xlane.xlu0 %980
    %v982 = vrcp.pop %v978
    %v983 = vrcp.pop %v981
    %v984 = vmul.f32 %v973, %v982
    %v985 = vmul.f32 %v975, %v983
    %v986 = vpack.c.bf16 %v984, %v984
    %v987 = vpack.c.bf16 %v985, %v985
    %988 = vrot.lane.b32.xlu0 %v176, 40
    %v989 = vpop.permute.xlu0 %988
    %v991 = vsel %vm181, %v986, 0
    %v994 = vsel %vm306, %v989, 0
    %996 = vmatprep.subr.bf16.mxu0 0
    %997 = vmatpush1.bf16.msra.mxu0 0
    %998 = vmatprep.subr.bf16.mxu0 0
    %999 = vmatpush1.bf16.msra.mxu0 0
    %1000 = vmatprep.subr.bf16.mxu0 0
    %1001 = vmatpush1.bf16.msra.mxu0 0
    %1002 = vmatprep.subr.bf16.mxu0 0
    %1003 = vmatpush1.bf16.msra.mxu0 0
    %1004 = vmatprep.subr.bf16.mxu0 0
    %1005 = vmatpush1.bf16.msra.mxu0 0
    %1006 = vmatprep.subr.bf16.mxu0 0
    %1007 = vmatpush1.bf16.msra.mxu0 0
    %1008 = vmatprep.subr.bf16.mxu0 0
    %1009 = vmatpush1.bf16.msra.mxu0 0
    %1010 = vmatprep.subr.bf16.mxu0 0
    %1011 = vmatpush1.bf16.msra.mxu0 %v994
    %1012 = vmatprep.subr.bf16.mxu0 0
    %1013 = vmatpush2.bf16.msra.mxu0 0
    %1014 = vmatprep.subr.bf16.mxu0 0
    %1015 = vmatpush2.bf16.msra.mxu0 0
    %1016 = vmatprep.subr.bf16.mxu0 0
    %1017 = vmatpush2.bf16.msra.mxu0 0
    %1018 = vmatprep.subr.bf16.mxu0 0
    %1019 = vmatpush2.bf16.msra.mxu0 0
    %1020 = vmatprep.subr.bf16.mxu0 0
    %1021 = vmatpush2.bf16.msra.mxu0 0
    %1022 = vmatprep.subr.bf16.mxu0 0
    %1023 = vmatpush2.bf16.msra.mxu0 0
    %1024 = vmatprep.subr.bf16.mxu0 0
    %1025 = vmatpush2.bf16.msra.mxu0 0
    %1026 = vmatprep.subr.bf16.mxu0 0
    %1027 = vmatpush2.bf16.msra.mxu0 0
    %1028 = vmatprep.mubr.bf16.mxu0 0
    %1029 = vmatmul.mubr.bf16.gmra.mxu0 %v991
    %v1030 = vpop.f32.mrf.mxu0
    %v1031 = vadd.f32 0.0, %v1030
    %v1032 = vpop.f32.mrf.mxu0
    %v1033 = vpop.f32.mrf.mxu0
    %v1034 = vpop.f32.mrf.mxu0
    %1035 = vdwg.mxu0
    %1036 = vrot.lane.b32.xlu0 %v177, 40
    %v1037 = vpop.permute.xlu0 %1036
    %v1039 = vsel %vm181, %v987, 0
    %v1042 = vsel %vm306, %v1037, 0
    %1044 = vmatprep.subr.bf16.mxu0 0
    %1045 = vmatpush1.bf16.msra.mxu0 0
    %1046 = vmatprep.subr.bf16.mxu0 0
    %1047 = vmatpush1.bf16.msra.mxu0 0
    %1048 = vmatprep.subr.bf16.mxu0 0
    %1049 = vmatpush1.bf16.msra.mxu0 0
    %1050 = vmatprep.subr.bf16.mxu0 0
    %1051 = vmatpush1.bf16.msra.mxu0 0
    %1052 = vmatprep.subr.bf16.mxu0 0
    %1053 = vmatpush1.bf16.msra.mxu0 0
    %1054 = vmatprep.subr.bf16.mxu0 0
    %1055 = vmatpush1.bf16.msra.mxu0 0
    %1056 = vmatprep.subr.bf16.mxu0 0
    %1057 = vmatpush1.bf16.msra.mxu0 0
    %1058 = vmatprep.subr.bf16.mxu0 0
    %1059 = vmatpush1.bf16.msra.mxu0 %v1042
    %1060 = vmatprep.subr.bf16.mxu0 0
    %1061 = vmatpush2.bf16.msra.mxu0 0
    %1062 = vmatprep.subr.bf16.mxu0 0
    %1063 = vmatpush2.bf16.msra.mxu0 0
    %1064 = vmatprep.subr.bf16.mxu0 0
    %1065 = vmatpush2.bf16.msra.mxu0 0
    %1066 = vmatprep.subr.bf16.mxu0 0
    %1067 = vmatpush2.bf16.msra.mxu0 0
    %1068 = vmatprep.subr.bf16.mxu0 0
    %1069 = vmatpush2.bf16.msra.mxu0 0
    %1070 = vmatprep.subr.bf16.mxu0 0
    %1071 = vmatpush2.bf16.msra.mxu0 0
    %1072 = vmatprep.subr.bf16.mxu0 0
    %1073 = vmatpush2.bf16.msra.mxu0 0
    %1074 = vmatprep.subr.bf16.mxu0 0
    %1075 = vmatpush2.bf16.msra.mxu0 0
    %1076 = vmatprep.mubr.bf16.mxu0 0
    %1077 = vmatmul.mubr.bf16.gmra.mxu0 %v1039
    %v1078 = vpop.f32.mrf.mxu0
    %v1079 = vadd.f32 0.0, %v1078
    %v1080 = vpop.f32.mrf.mxu0
    %v1081 = vpop.f32.mrf.mxu0
    %v1082 = vpop.f32.mrf.mxu0
    %1083 = vdwg.mxu0
    %1086 = vrot.lane.b32.xlu0 %v1031, 24
    %v1087 = vpop.permute.xlu0 %1086
    %1088 = vrot.lane.b32.xlu0 %v1079, 24
    %v1089 = vpop.permute.xlu0 %1088
    %vm1092 = vcmask 261312
    %1093 = vst.msk [vmem:[#allocation2] sm:$0xff] %vm1092, %v1087
    %1094 = vst.msk [vmem:[#allocation2 + $0x8] sm:$0xff] %vm1092, %v1089
    %v1095 = vld [vmem:[#allocation2] sm:$0xff]
    %v1096 = vld [vmem:[#allocation2 + $0x8] sm:$0xff]
    %v1097 = vpack.c.bf16 %v1096, %v1095
    %v1098 = vld [vmem:[%s2] sm:$0xf]
    %v1099 = vld [vmem:[%s2 + $0x4] sm:$0xf]
    %v1100 = vld [vmem:[%s2 + $0x8] sm:$0xf]
    %v1101 = vld [vmem:[%s2 + $0xc] sm:$0xf]
    %v1102 = vld [vmem:[%s3] sm:$0x1]
    %v1104 = vlaneseq
    %v1105 = vshrl.u32 %v1104, 7
    %v1106 = vsub.s32 0, %v1105
    %v1107 = vrot.slane %v1102, %v1106
    %v1113 = vunpack.c.l.b16 %v1098
    %v1114 = vunpack.c.l.b16 %v1099
    %v1115 = vunpack.c.l.b16 %v1100
    %v1116 = vunpack.c.l.b16 %v1101
    %v1117 = vpack.c.b16 %v1114, %v1113
    %v1118 = vpack.c.b16 %v1116, %v1115
    %v1122 = vsel %vm61, %v1097, 0
    %1124 = vmatprep.subr.bf16.mxu0 0
    %1125 = vmatpush1.bf16.msra.mxu0 0
    %1126 = vmatprep.subr.bf16.mxu0 0
    %1127 = vmatpush1.bf16.msra.mxu0 0
    %1128 = vmatprep.subr.bf16.mxu0 0
    %1129 = vmatpush1.bf16.msra.mxu0 0
    %1130 = vmatprep.subr.bf16.mxu0 0
    %1131 = vmatpush1.bf16.msra.mxu0 0
    %1132 = vmatprep.subr.bf16.mxu0 0
    %1133 = vmatpush1.bf16.msra.mxu0 0
    %1134 = vmatprep.subr.bf16.mxu0 0
    %1135 = vmatpush1.bf16.msra.mxu0 0
    %1136 = vmatprep.subr.bf16.mxu0 0
    %1137 = vmatpush1.bf16.msra.mxu0 %v1118
    %1138 = vmatprep.subr.bf16.mxu0 0
    %1139 = vmatpush1.bf16.msra.mxu0 %v1117
    %1140 = vmatprep.subr.bf16.mxu0 0
    %1141 = vmatpush2.bf16.msra.mxu0 0
    %1142 = vmatprep.subr.bf16.mxu0 0
    %1143 = vmatpush2.bf16.msra.mxu0 0
    %1144 = vmatprep.subr.bf16.mxu0 0
    %1145 = vmatpush2.bf16.msra.mxu0 0
    %1146 = vmatprep.subr.bf16.mxu0 0
    %1147 = vmatpush2.bf16.msra.mxu0 0
    %1148 = vmatprep.subr.bf16.mxu0 0
    %1149 = vmatpush2.bf16.msra.mxu0 0
    %1150 = vmatprep.subr.bf16.mxu0 0
    %1151 = vmatpush2.bf16.msra.mxu0 0
    %1152 = vmatprep.subr.bf16.mxu0 0
    %1153 = vmatpush2.bf16.msra.mxu0 0
    %1154 = vmatprep.subr.bf16.mxu0 0
    %1155 = vmatpush2.bf16.msra.mxu0 0
    %1156 = vmatprep.mubr.bf16.mxu0 0
    %1157 = vmatmul.mubr.bf16.gmra.mxu0 %v1122
    %v1158 = vpop.f32.mrf.mxu0
    %v1159 = vadd.f32 %v1107, %v1158
    %v1160 = vpop.f32.mrf.mxu0
    %v1161 = vpop.f32.mrf.mxu0
    %v1162 = vadd.f32 %v1107, %v1161
    %v1163 = vpop.f32.mrf.mxu0
    %1164 = vdwg.mxu0
    %v1165 = vadd.f32 %v57, %v1159
    %v1166 = vadd.f32 %v58, %v1162
    %v1167 = vld [vmem:[%s10] sm:$0x1]
    %v1168 = vld [vmem:[%s11] sm:$0x1]
    %v1169 = vsel %vm61, %v1165, 0.0
    %1170 = vadd.xlane.f32.xlu0 %v1169
    %v1171 = vpop.xlane.xlu0 %1170
    %v1172 = vsel %vm61, %v1166, 0.0
    %1173 = vadd.xlane.f32.xlu0 %v1172
    %v1174 = vpop.xlane.xlu0 %1173
    %v1175 = vmul.f32 %v1171, %v68
    %v1176 = vmul.f32 %v1174, %v68
    %v1177 = vsub.f32 %v1165, %v1175
    %v1178 = vsub.f32 %v1166, %v1176
    %v1179 = vmul.f32 %v1177, %v1177
    %v1180 = vmul.f32 %v1178, %v1178
    %v1181 = vsel %vm61, %v1179, 0.0
    %1182 = vadd.xlane.f32.xlu0 %v1181
    %v1183 = vpop.xlane.xlu0 %1182
    %v1184 = vsel %vm61, %v1180, 0.0
    %1185 = vadd.xlane.f32.xlu0 %v1184
    %v1186 = vpop.xlane.xlu0 %1185
    %v1187 = vmul.f32 %v1183, %v68
    %v1188 = vmul.f32 %v1186, %v68
    %v1189 = vadd.f32 %v1187, 0.0001
    %v1190 = vadd.f32 %v1188, 0.0001
    %v1191 = vrsqrt.pop %v1189
    %v1192 = vrsqrt.pop %v1190
    %v1193 = vmul.f32 %v1177, %v1191
    %v1194 = vmul.f32 %v1178, %v1192
    %v1196 = vlaneseq
    %v1197 = vshrl.u32 %v1196, 7
    %v1198 = vsub.s32 0, %v1197
    %v1199 = vrot.slane %v1167, %v1198
    %v1201 = vmul.f32 %v1193, %v1199
    %v1202 = vmul.f32 %v1194, %v1199
    %v1204 = vlaneseq
    %v1205 = vshrl.u32 %v1204, 7
    %v1206 = vsub.s32 0, %v1205
    %v1207 = vrot.slane %v1168, %v1206
    %v1209 = vadd.f32 %v1201, %v1207
    %v1210 = vadd.f32 %v1202, %v1207
    %v1211 = vpack.c.bf16 %v1210, %v1209
    %v1212 = vld [vmem:[#allocation3] sm:$0xf]
    %v1213 = vld [vmem:[#allocation3 + $0x4] sm:$0xf]
    %v1214 = vld [vmem:[#allocation3 + $0x8] sm:$0xf]
    %v1215 = vld [vmem:[#allocation3 + $0xc] sm:$0xf]
    %v1216 = vld [vmem:[%s5] sm:$0x1]
    %v1218 = vlaneseq
    %v1219 = vshrl.u32 %v1218, 7
    %v1220 = vsub.s32 0, %v1219
    %v1221 = vrot.slane %v1216, %v1220
    %v1227 = vunpack.c.l.b16 %v1212
    %v1228 = vunpack.c.l.b16 %v1213
    %v1229 = vunpack.c.l.b16 %v1214
    %v1230 = vunpack.c.l.b16 %v1215
    %v1231 = vpack.c.b16 %v1228, %v1227
    %v1232 = vpack.c.b16 %v1230, %v1229
    %v1236 = vsel %vm61, %v1211, 0
    %1238 = vmatprep.subr.bf16.mxu0 0
    %1239 = vmatpush1.bf16.msra.mxu0 0
    %1240 = vmatprep.subr.bf16.mxu0 0
    %1241 = vmatpush1.bf16.msra.mxu0 0
    %1242 = vmatprep.subr.bf16.mxu0 0
    %1243 = vmatpush1.bf16.msra.mxu0 0
    %1244 = vmatprep.subr.bf16.mxu0 0
    %1245 = vmatpush1.bf16.msra.mxu0 0
    %1246 = vmatprep.subr.bf16.mxu0 0
    %1247 = vmatpush1.bf16.msra.mxu0 0
    %1248 = vmatprep.subr.bf16.mxu0 0
    %1249 = vmatpush1.bf16.msra.mxu0 0
    %1250 = vmatprep.subr.bf16.mxu0 0
    %1251 = vmatpush1.bf16.msra.mxu0 %v1232
    %1252 = vmatprep.subr.bf16.mxu0 0
    %1253 = vmatpush1.bf16.msra.mxu0 %v1231
    %1254 = vmatprep.subr.bf16.mxu0 0
    %1255 = vmatpush2.bf16.msra.mxu0 0
    %1256 = vmatprep.subr.bf16.mxu0 0
    %1257 = vmatpush2.bf16.msra.mxu0 0
    %1258 = vmatprep.subr.bf16.mxu0 0
    %1259 = vmatpush2.bf16.msra.mxu0 0
    %1260 = vmatprep.subr.bf16.mxu0 0
    %1261 = vmatpush2.bf16.msra.mxu0 0
    %1262 = vmatprep.subr.bf16.mxu0 0
    %1263 = vmatpush2.bf16.msra.mxu0 0
    %1264 = vmatprep.subr.bf16.mxu0 0
    %1265 = vmatpush2.bf16.msra.mxu0 0
    %1266 = vmatprep.subr.bf16.mxu0 0
    %1267 = vmatpush2.bf16.msra.mxu0 0
    %1268 = vmatprep.subr.bf16.mxu0 0
    %1269 = vmatpush2.bf16.msra.mxu0 0
    %1270 = vmatprep.mubr.bf16.mxu0 0
    %1271 = vmatmul.mubr.bf16.gmra.mxu0 %v1236
    %v1272 = vpop.f32.mrf.mxu0
    %v1273 = vadd.f32 %v1221, %v1272
    %v1274 = vpop.f32.mrf.mxu0
    %v1275 = vpop.f32.mrf.mxu0
    %v1276 = vadd.f32 %v1221, %v1275
    %v1277 = vpop.f32.mrf.mxu0
    %1278 = vdwg.mxu0
    %v1279 = vmax.f32 %v1273, 0.0
    %v1280 = vmax.f32 %v1276, 0.0
    %v1281 = vpack.c.bf16 %v1280, %v1279
    %v1282 = vld [vmem:[%s6] sm:$0xf]
    %v1283 = vld [vmem:[%s6 + $0x4] sm:$0xf]
    %v1284 = vld [vmem:[%s6 + $0x8] sm:$0xf]
    %v1285 = vld [vmem:[%s6 + $0xc] sm:$0xf]
    %v1286 = vld [vmem:[%s6 + $0x10] sm:$0xf]
    %v1287 = vld [vmem:[%s6 + $0x14] sm:$0xf]
    %v1288 = vld [vmem:[%s6 + $0x18] sm:$0xf]
    %v1289 = vld [vmem:[%s6 + $0x1c] sm:$0xf]
    %v1290 = vld [vmem:[%s7] sm:$0x1]
    %v1292 = vlaneseq
    %v1293 = vshrl.u32 %v1292, 7
    %v1294 = vsub.s32 0, %v1293
    %v1295 = vrot.slane %v1290, %v1294
    %v1305 = vunpack.c.l.b16 %v1282
    %v1306 = vunpack.c.l.b16 %v1283
    %v1307 = vunpack.c.l.b16 %v1284
    %v1308 = vunpack.c.l.b16 %v1285
    %v1309 = vunpack.c.l.b16 %v1286
    %v1310 = vunpack.c.l.b16 %v1287
    %v1311 = vunpack.c.l.b16 %v1288
    %v1312 = vunpack.c.l.b16 %v1289
    %v1313 = vpack.c.b16 %v1306, %v1305
    %v1314 = vpack.c.b16 %v1308, %v1307
    %v1315 = vpack.c.b16 %v1310, %v1309
    %v1316 = vpack.c.b16 %v1312, %v1311
    %vm1321 = vcmask 523264
    %v1323 = vsel %vm1321, %v1281, 0
    %1325 = vmatprep.subr.bf16.mxu0 0
    %1326 = vmatpush1.bf16.msra.mxu0 0
    %1327 = vmatprep.subr.bf16.mxu0 0
    %1328 = vmatpush1.bf16.msra.mxu0 0
    %1329 = vmatprep.subr.bf16.mxu0 0
    %1330 = vmatpush1.bf16.msra.mxu0 0
    %1331 = vmatprep.subr.bf16.mxu0 0
    %1332 = vmatpush1.bf16.msra.mxu0 0
    %1333 = vmatprep.subr.bf16.mxu0 0
    %1334 = vmatpush1.bf16.msra.mxu0 %v1316
    %1335 = vmatprep.subr.bf16.mxu0 0
    %1336 = vmatpush1.bf16.msra.mxu0 %v1315
    %1337 = vmatprep.subr.bf16.mxu0 0
    %1338 = vmatpush1.bf16.msra.mxu0 %v1314
    %1339 = vmatprep.subr.bf16.mxu0 0
    %1340 = vmatpush1.bf16.msra.mxu0 %v1313
    %1341 = vmatprep.subr.bf16.mxu0 0
    %1342 = vmatpush2.bf16.msra.mxu0 0
    %1343 = vmatprep.subr.bf16.mxu0 0
    %1344 = vmatpush2.bf16.msra.mxu0 0
    %1345 = vmatprep.subr.bf16.mxu0 0
    %1346 = vmatpush2.bf16.msra.mxu0 0
    %1347 = vmatprep.subr.bf16.mxu0 0
    %1348 = vmatpush2.bf16.msra.mxu0 0
    %1349 = vmatprep.subr.bf16.mxu0 0
    %1350 = vmatpush2.bf16.msra.mxu0 0
    %1351 = vmatprep.subr.bf16.mxu0 0
    %1352 = vmatpush2.bf16.msra.mxu0 0
    %1353 = vmatprep.subr.bf16.mxu0 0
    %1354 = vmatpush2.bf16.msra.mxu0 0
    %1355 = vmatprep.subr.bf16.mxu0 0
    %1356 = vmatpush2.bf16.msra.mxu0 0
    %1357 = vmatprep.mubr.bf16.mxu0 0
    %1358 = vmatmul.mubr.bf16.gmra.mxu0 %v1323
    %v1359 = vpop.f32.mrf.mxu0
    %v1360 = vadd.f32 %v1295, %v1359
    %v1361 = vpop.f32.mrf.mxu0
    %v1362 = vpop.f32.mrf.mxu0
    %v1363 = vadd.f32 %v1295, %v1362
    %v1364 = vpop.f32.mrf.mxu0
    %1365 = vdwg.mxu0
    %v1366 = vadd.f32 %v1165, %v1360
    %v1367 = vadd.f32 %v1166, %v1363
    %1368 = vst.msk [vmem:[#allocation6] sm:$0xff] %vm61, %v1366
    %1369 = vst.msk [vmem:[#allocation6 + $0x8] sm:$0xff] %vm61, %v1367
    // Predicated region
    $region54: #{tpu_custom_call.1} parent=1 // pred_check
      _
    $region55: #{tpu_custom_call.1} parent=1 // pred_check_branch
      %1371 = sbr.rel (0) target = $region57
    $region56: #{tpu_custom_call.1} parent=1 // pred_region
      %s1373 = ssub.s32 256, 256
      %1374 = vsyncadd [#allocation5], %s1373
      %s1375 = sshll.u32 [#allocation6], 4
      %s1376 = int_to_ptr.vmem [resolvable:$true] %s1375
      %1381 = dma.vmem_to_hbm [thread:$0]  %s1376, 256, %s12, [#allocation5], 128, 128, 8
    $region57: #{tpu_custom_call.1} parent=1 // pred_fallthru
      _
    // Predicated region
    $region58: #{tpu_custom_call.1} parent=1 // pred_check
      _
    $region59: #{tpu_custom_call.1} parent=1 // pred_check_branch
      %1383 = sbr.rel (0) target = $region61
    $region60: #{tpu_custom_call.1} parent=1 // pred_region
      %1384 = dma.done [#allocation5], 256
    $region61: #{tpu_custom_call.1} parent=1 // pred_fallthru
      _
    %1385 = vsyncpa [#allocation4], 1
    %1386 = vsyncpa [#allocation5], 1

</llo_original>
